<compile_context>
chip_gen: v5e
topology: v5e:2x2
jax: 0.10.0
libtpu: 0.0.40
codegen_flags: <defaults>
</compile_context>

<pallas_src>
import numpy as np
import jax
import jax.numpy as jnp
from jax.experimental import pallas as pl
from jax.experimental.pallas import tpu as pltpu

MXU_DT = jnp.bfloat16   # matmul operand dtype (accumulation stays float32)

# ----------------------------------------------------------------------------
# Packed-parameter layout.  Conv weights are stored im2col-style as
# (C_out, K*C_in + 1) with the bias folded in as the last column (the patches
# get a matching ones row).  Sections are 8-row aligned.
# ----------------------------------------------------------------------------
_CONV_LAYERS = [
    # name, C_out, packed width (= K * C_in + 1 bias column)
    ("conv1", 16, 7 + 1),          # Conv1d(1, 16, k=7, s=2, p=3): 7 phase taps
    ("conv2", 32, 3 * 16 + 1),
    ("skip1", 32, 16 + 1),
    ("conv3", 64, 3 * 32 + 1),
    ("conv4", 32, 3 * 64 + 1),
    ("skip2", 32, 64 + 1),
    ("conv5", 16, 3 * 32 + 1),
    ("conv6", 8, 3 * 16 + 1),
    ("attn_q", 1, 8 + 1),
    ("attn_k", 1, 8 + 1),
    ("attn_v", 8, 8 + 1),
    ("conv7", 1, 3 * 8 + 1),
]
W_OFF = {}
_r = 0
for _name, _co, _w in _CONV_LAYERS:
    W_OFF[_name] = (_r, _co, _w)
    _r += ((_co + 7) // 8) * 8          # 8-align each section (sublane friendly)
CW_ROWS = _r                            # 264
CW_COLS = max(w for _, _, w in _CONV_LAYERS)   # 193

# MLP (BatchNorm eval stats folded in).  Layer-1 bias is folded as weight row 7
# (the MLP input gets a ones column).  Layer-3 (64->1) is applied on the VPU
# from a lane-major row stored in `mb`.
MW1_R0, MW1_R1 = 0, 8            # rows 0..6 = W1 (7,128), row 7 = b1
MW2_R0, MW2_R1 = 8, 8 + 128      # W2 (128,64)
MW_ROWS, MW_COLS = MW2_R1, 128
MB_B2 = (0, 64)                  # layer-2 bias
MB_W3 = (64, 128)                # layer-3 weight (64,) as a lane row
MB_B3 = 128                      # layer-3 bias
MB_GAMMA = 129                   # SelfAttention1d gamma
MB_COLS = 192


# ----------------------------------------------------------------------------
# Parameters (logical, PyTorch-like shapes) and host-side packing.
# ----------------------------------------------------------------------------
_PARAM_SHAPES = [
    ("conv1_w", (16, 1, 7)),  ("conv1_b", (16,)),
    ("conv2_w", (32, 16, 3)), ("conv2_b", (32,)),
    ("skip1_w", (32, 16, 1)), ("skip1_b", (32,)),
    ("conv3_w", (64, 32, 3)), ("conv3_b", (64,)),
    ("conv4_w", (32, 64, 3)), ("conv4_b", (32,)),
    ("skip2_w", (32, 64, 1)), ("skip2_b", (32,)),
    ("conv5_w", (16, 32, 3)), ("conv5_b", (16,)),
    ("conv6_w", (8, 16, 3)),  ("conv6_b", (8,)),
    ("attn_q_w", (1, 8, 1)),  ("attn_q_b", (1,)),
    ("attn_k_w", (1, 8, 1)),  ("attn_k_b", (1,)),
    ("attn_v_w", (8, 8, 1)),  ("attn_v_b", (8,)),
    ("attn_gamma", (1,)),
    ("conv7_w", (1, 8, 3)),   ("conv7_b", (1,)),
    ("mlp_w1", (7, 128)),     ("mlp_b1", (128,)),
    ("bn1_g", (128,)), ("bn1_b", (128,)), ("bn1_m", (128,)), ("bn1_v", (128,)),
    ("mlp_w2", (128, 64)),    ("mlp_b2", (64,)),
    ("bn2_g", (64,)),  ("bn2_b", (64,)),  ("bn2_m", (64,)),  ("bn2_v", (64,)),
    ("mlp_w3", (64, 1)),      ("mlp_b3", (1,)),
]


def init_params(key):
    params = {}
    for name, shape in _PARAM_SHAPES:
        key, sub = jax.random.split(key)
        if name == "attn_gamma":
            params[name] = jnp.zeros(shape, jnp.float32)       # torch.zeros(1)
        elif name in ("bn1_g", "bn1_v", "bn2_g", "bn2_v"):
            params[name] = jnp.ones(shape, jnp.float32)         # BN weight / var
        elif name in ("bn1_b", "bn1_m", "bn2_b", "bn2_m"):
            params[name] = jnp.zeros(shape, jnp.float32)        # BN bias / mean
        else:
            params[name] = (0.1 * jax.random.normal(sub, shape)).astype(jnp.float32)
    return params


def _im2col_w(w):
    """(C_out, C_in, K) -> (C_out, K*C_in), column index = k*C_in + c."""
    co, ci, kk = w.shape
    return jnp.transpose(w, (0, 2, 1)).reshape(co, kk * ci)


def _with_bias(w2d, b):
    return jnp.concatenate([w2d, b[:, None]], axis=1)


def pack_params(p):
    """Pack all parameters into 3 arrays; fold eval-mode BN and all biases."""
    conv_w = {
        # conv1 tap order inside the kernel is [E:-1, E:0, E:+1, O:-2, O:-1, O:0, O:+1]
        # which corresponds to original taps j = [1, 3, 5, 0, 2, 4, 6].
        "conv1": _with_bias(
            p["conv1_w"][:, 0, :][:, jnp.array([1, 3, 5, 0, 2, 4, 6])], p["conv1_b"]),
        "conv2": _with_bias(_im2col_w(p["conv2_w"]), p["conv2_b"]),
        "skip1": _with_bias(p["skip1_w"][:, :, 0], p["skip1_b"]),
        "conv3": _with_bias(_im2col_w(p["conv3_w"]), p["conv3_b"]),
        "conv4": _with_bias(_im2col_w(p["conv4_w"]), p["conv4_b"]),
        "skip2": _with_bias(p["skip2_w"][:, :, 0], p["skip2_b"]),
        "conv5": _with_bias(_im2col_w(p["conv5_w"]), p["conv5_b"]),
        "conv6": _with_bias(_im2col_w(p["conv6_w"]), p["conv6_b"]),
        "attn_q": _with_bias(p["attn_q_w"][:, :, 0], p["attn_q_b"]),
        "attn_k": _with_bias(p["attn_k_w"][:, :, 0], p["attn_k_b"]),
        "attn_v": _with_bias(p["attn_v_w"][:, :, 0], p["attn_v_b"]),
        "conv7": _with_bias(_im2col_w(p["conv7_w"]), p["conv7_b"]),
    }
    cw = jnp.zeros((CW_ROWS, CW_COLS), jnp.float32)
    for name, (r0, co, w) in W_OFF.items():
        cw = cw.at[r0:r0 + co, 0:w].set(conv_w[name])

    # Fold BatchNorm (eval) into the adjacent linear layers.
    eps = 1e-5
    s1 = p["bn1_g"] / jnp.sqrt(p["bn1_v"] + eps)
    w1 = p["mlp_w1"] * s1[None, :]
    b1 = (p["mlp_b1"] - p["bn1_m"]) * s1 + p["bn1_b"]
    s2 = p["bn2_g"] / jnp.sqrt(p["bn2_v"] + eps)
    w2 = p["mlp_w2"] * s2[None, :]
    b2 = (p["mlp_b2"] - p["bn2_m"]) * s2 + p["bn2_b"]

    mw = jnp.zeros((MW_ROWS, MW_COLS), jnp.float32)
    mw = mw.at[0:7, 0:128].set(w1)
    mw = mw.at[7, 0:128].set(b1)
    mw = mw.at[MW2_R0:MW2_R1, 0:64].set(w2)

    mb = jnp.zeros((1, MB_COLS), jnp.float32)
    mb = mb.at[0, MB_B2[0]:MB_B2[1]].set(b2)
    mb = mb.at[0, MB_W3[0]:MB_W3[1]].set(p["mlp_w3"][:, 0])
    mb = mb.at[0, MB_B3].set(p["mlp_b3"][0])
    mb = mb.at[0, MB_GAMMA].set(p["attn_gamma"][0])
    return cw.astype(MXU_DT), mw.astype(MXU_DT), mb


def _host_consts(TB, L2):
    """Grid-invariant constants (hoisted out of the kernel)."""
    N2 = TB * L2
    pos = np.arange(N2) % L2
    seg = np.arange(N2) // L2
    masks = np.stack([
        (pos >= 2),            # shift d = -2
        (pos >= 1),            # shift d = -1
        (pos <= L2 - 2),       # shift d = +1
    ]).astype(np.float32)                                              # (3, N2)
    pool = (seg[None, :] == np.arange(TB)[:, None]).astype(np.float32) / L2  # (TB, N2)
    bmask = (seg[None, :] == seg[:, None]).astype(np.float32)               # (N2, N2)
    return jnp.asarray(masks), jnp.asarray(pool), jnp.asarray(bmask)


# ----------------------------------------------------------------------------
# Kernel
# ----------------------------------------------------------------------------
def _make_kernel(TB, L2):
    N2 = TB * L2           # lanes: batch-major positions, g = b*L2 + t
    f32 = jnp.float32
    MASK_ROW = {-2: 0, -1: 1, 1: 2}
    use_roll = (N2 % 128 == 0)   # XLU roll for aligned lanes, slice fallback else

    def kernel(eo_ref, se_ref, cw_ref, mw_ref, mb_ref, masks_ref, pool_ref,
               bmask_ref, out_ref):
        ones_row = jnp.ones((1, N2), f32)

        def shift(x, d):
            """y[:, b*L2+t] = x[:, b*L2+t+d] if 0 <= t+d < L2 else 0."""
            amt = (-d) % N2
            if use_roll:
                rolled = pltpu.roll(x, amt, axis=1)              # XLU rotate
            else:
                rolled = jnp.concatenate(
                    [x[:, N2 - amt:], x[:, :N2 - amt]], axis=1)   # == jnp.roll
            return rolled * masks_ref[MASK_ROW[d]:MASK_ROW[d] + 1, :]

        def wgt(name):
            r0, co, w = W_OFF[name]
            return cw_ref[r0:r0 + co, 0:w]

        def leaky(x):
            return jnp.where(x > 0, x, 0.2 * x)

        def mm(w, patches):
            # bf16 MXU operands, f32 accumulation
            return jnp.dot(w, patches.astype(MXU_DT), preferred_element_type=f32)

        def conv_k3(x, name):
            # k=3, pad=1 conv as one im2col matmul (bias folded via ones row)
            patches = jnp.concatenate([shift(x, -1), x, shift(x, 1), ones_row],
                                      axis=0)
            return mm(wgt(name), patches)

        def conv_1x1(x, name):
            patches = jnp.concatenate([x, ones_row], axis=0)
            return mm(wgt(name), patches)

        eo = eo_ref[0]                           # (2, N2): even / odd ray phases
        ev, od = eo[0:1, :], eo[1:2, :]

        # conv1: Conv1d(1, 16, k=7, stride=2, pad=3) over host-deinterleaved phases
        p1 = jnp.concatenate(
            [shift(ev, -1), ev, shift(ev, 1),
             shift(od, -2), shift(od, -1), od, shift(od, 1), ones_row], axis=0)
        x1 = leaky(mm(wgt("conv1"), p1))                                 # (16, N2)

        # dropout = identity in eval mode
        x2 = leaky(conv_k3(x1, "conv2")) + conv_1x1(x1, "skip1")         # (32, N2)
        x3 = leaky(conv_k3(x2, "conv3"))                                 # (64, N2)
        x4 = leaky(conv_k3(x3, "conv4")) + conv_1x1(x3, "skip2")         # (32, N2)
        x5 = leaky(conv_k3(x4, "conv5"))                                 # (16, N2)
        x6 = leaky(conv_k3(x5, "conv6"))                                 # (8,  N2)

        # --- SelfAttention1d(8): per-sample rank-1 attention (f32 softmax) ---
        q = conv_1x1(x6, "attn_q")               # (1, N2)
        k = conv_1x1(x6, "attn_k")               # (1, N2)
        v = conv_1x1(x6, "attn_v")               # (8, N2)

        # per-sample key rows: k_rep[g, j] = k[0, (g // L2) * L2 + j]
        k_rep = jnp.concatenate(
            [jnp.broadcast_to(k[:, b * L2:(b + 1) * L2], (L2, L2))
             for b in range(TB)], axis=0)                                 # (N2, L2)
        s = jnp.transpose(q) * k_rep                                      # (N2, L2)
        s = s - jnp.max(s, axis=-1, keepdims=True)
        pexp = jnp.exp(s)
        p_att = pexp / jnp.sum(pexp, axis=-1, keepdims=True)              # (N2, L2)

        # Expand per-sample probabilities to a block-diagonal (key, query)
        # matrix (host-precomputed mask) and contract with V in one MXU pass.
        p_t = jnp.transpose(p_att)                                        # (L2, N2)
        p_full_t = jnp.concatenate([p_t] * TB, axis=0) * bmask_ref[...]   # (N2, N2)
        attn_out = jnp.dot(v, p_full_t, preferred_element_type=f32)       # (8, N2)

        gamma = mb_ref[:, MB_GAMMA:MB_GAMMA + 1]                          # (1, 1)
        x_att = gamma * attn_out + x6

        x_fin = conv_k3(x_att, "conv7")                                   # (1, N2)

        # per-sample mean over ray positions (host-precomputed pooling weights)
        feat = jnp.sum(pool_ref[...] * x_fin, axis=1, keepdims=True)      # (TB, 1)

        # --- MLP head (BN folded; layer-1 bias folded via ones column) ---
        ones_col = jnp.ones((TB, 1), f32)
        h0 = jnp.concatenate([feat, se_ref[0], ones_col], axis=1)         # (TB, 8)
        h1 = leaky(jnp.dot(h0.astype(MXU_DT), mw_ref[MW1_R0:MW1_R1, 0:128],
                           preferred_element_type=f32))                   # (TB, 128)
        h2 = leaky(jnp.dot(h1.astype(MXU_DT), mw_ref[MW2_R0:MW2_R1, 0:64],
                           preferred_element_type=f32)
                   + mb_ref[:, MB_B2[0]:MB_B2[1]])                        # (TB, 64)
        # final 64 -> 1 on the VPU (avoids a width-1 MXU matmul), kept in f32
        h3 = (jnp.sum(h2 * mb_ref[:, MB_W3[0]:MB_W3[1]], axis=1, keepdims=True)
              + mb_ref[:, MB_B3:MB_B3 + 1])                               # (TB, 1)

        # numerically-stable sigmoid; lane-dense (1, TB) output
        z = jnp.exp(-jnp.abs(h3))
        r = 1.0 / (1.0 + z)
        y = jnp.where(h3 >= 0, r, z * r)
        out_ref[0] = jnp.transpose(y)                                     # (1, TB)

    return kernel


# ----------------------------------------------------------------------------
# Wrapper
# ----------------------------------------------------------------------------
def discriminator_forward(ray, start_point, end_point, packed):
    """ray: (B, L); start_point/end_point: (B, 3). Returns validity (B, 1)."""
    cw, mw, mb = packed
    B, L = ray.shape
    assert L % 2 == 0, "num_points must be even (stride-2 conv1)"
    L2 = L // 2

    # Size the batch tile so the lane axis (TB*L2) targets ~256 lanes.
    # TODO(synk): on v7x prefer keeping num_tiles >= 2 so both TCs are fed.
    TB = max(1, min(B, max(1, 256 // L2)))
    num_tiles = -(-B // TB)
    Bp = num_tiles * TB
    N2 = TB * L2

    ray = ray.astype(jnp.float32)
    se = jnp.concatenate([start_point, end_point], axis=1).astype(jnp.float32)
    if Bp != B:
        ray = jnp.concatenate([ray, jnp.zeros((Bp - B, L), jnp.float32)], axis=0)
        se = jnp.concatenate([se, jnp.zeros((Bp - B, 6), jnp.float32)], axis=0)

    # Host-side even/odd de-interleave: the stride-2 conv1 becomes ordinary
    # unit-stride taps over the two phases inside the kernel.
    ev = ray[:, 0::2].reshape(num_tiles, TB, L2)
    od = ray[:, 1::2].reshape(num_tiles, TB, L2)
    eo = jnp.stack([ev, od], axis=1).reshape(num_tiles, 2, N2)   # batch-major lanes
    se = se.reshape(num_tiles, TB, 6)

    masks, pool, bmask = _host_consts(TB, L2)

    kernel = _make_kernel(TB, L2)
    out = pl.pallas_call(
        kernel,
        out_shape=jax.ShapeDtypeStruct((num_tiles, 1, TB), jnp.float32),
        grid=(num_tiles,),
        in_specs=[
            pl.BlockSpec((1, 2, N2), lambda i: (i, 0, 0)),        # even/odd phases
            pl.BlockSpec((1, TB, 6), lambda i: (i, 0, 0)),        # start/end points
            pl.BlockSpec((CW_ROWS, CW_COLS), lambda i: (0, 0)),   # conv weights (bf16)
            pl.BlockSpec((MW_ROWS, MW_COLS), lambda i: (0, 0)),   # MLP weights (bf16)
            pl.BlockSpec((1, MB_COLS), lambda i: (0, 0)),         # MLP biases / w3 / gamma
            pl.BlockSpec((3, N2), lambda i: (0, 0)),              # shift masks
            pl.BlockSpec((TB, N2), lambda i: (0, 0)),             # mean-pool weights
            pl.BlockSpec((N2, N2), lambda i: (0, 0)),             # same-sample mask
        ],
        out_specs=pl.BlockSpec((1, 1, TB), lambda i: (i, 0, 0)),
        compiler_params=pltpu.CompilerParams(
            dimension_semantics=("parallel",)),
    )(eo, se, cw, mw, mb, masks, pool, bmask)
    return out.reshape(Bp, 1)[:B]


if __name__ == "__main__":
    key = jax.random.PRNGKey(0)
    k_ray, k_s, k_e, k_p = jax.random.split(key, 4)

    B, num_points = 2, 16
    ray = jax.random.normal(k_ray, (B, num_points), dtype=jnp.float32)
    start_point = jax.random.normal(k_s, (B, 3), dtype=jnp.float32)
    end_point = jax.random.normal(k_e, (B, 3), dtype=jnp.float32)

    packed = pack_params(init_params(k_p))

    fwd = jax.jit(discriminator_forward)
    out = fwd(ray, start_point, end_point, packed)
    out = jax.block_until_ready(out)

    assert out.shape == (B, 1), out.shape
    assert bool(jnp.all(jnp.isfinite(out)))
    assert bool(jnp.all((out > 0.0) & (out < 1.0)))  # sigmoid output range
    print("KERNEL_OK")
</pallas_src>

<mosaic_0001>
module attributes {stable_mosaic.version = 11 : i64} {
  func.func @kernel(%arg0: i32, %arg1: memref<1x2x16xf32, #tpu.memory_space<vmem>>, %arg2: memref<1x2x6xf32, #tpu.memory_space<vmem>>, %arg3: memref<264x193xbf16, #tpu.memory_space<vmem>>, %arg4: memref<136x128xbf16, #tpu.memory_space<vmem>>, %arg5: memref<1x192xf32, #tpu.memory_space<vmem>>, %arg6: memref<3x16xf32, #tpu.memory_space<vmem>>, %arg7: memref<2x16xf32, #tpu.memory_space<vmem>>, %arg8: memref<16x16xf32, #tpu.memory_space<vmem>>, %arg9: memref<1x1x2xf32, #tpu.memory_space<vmem>>) attributes {dimension_semantics = [#tpu.dimension_semantics<parallel>], iteration_bounds = array<i64: 1>, scalar_prefetch = 0 : i64, scratch_operands = 0 : i64, tpu.core_type = #tpu.core_type<tc>, window_params = [{transform_indices = @transform_0, window_bounds = array<i64: 1, 2, 16>}, {transform_indices = @transform_1, window_bounds = array<i64: 1, 2, 6>}, {pipeline_mode = #tpu.pipeline_mode<synchronous>, transform_indices = @transform_2, window_bounds = array<i64: 264, 193>}, {pipeline_mode = #tpu.pipeline_mode<synchronous>, transform_indices = @transform_3, window_bounds = array<i64: 136, 128>}, {pipeline_mode = #tpu.pipeline_mode<synchronous>, transform_indices = @transform_4, window_bounds = array<i64: 1, 192>}, {pipeline_mode = #tpu.pipeline_mode<synchronous>, transform_indices = @transform_5, window_bounds = array<i64: 3, 16>}, {pipeline_mode = #tpu.pipeline_mode<synchronous>, transform_indices = @transform_6, window_bounds = array<i64: 2, 16>}, {pipeline_mode = #tpu.pipeline_mode<synchronous>, transform_indices = @transform_7, window_bounds = array<i64: 16, 16>}, {transform_indices = @transform_8, window_bounds = array<i64: 1, 1, 2>}]} {
    %cst = arith.constant 1.000000e+00 : f32
    %0 = vector.broadcast %cst : f32 to vector<1x16xf32>
    %c0 = arith.constant 0 : index
    %c0_0 = arith.constant 0 : index
    %c0_1 = arith.constant 0 : index
    %1 = vector.load %arg1[%c0, %c0_0, %c0_1] : memref<1x2x16xf32, #tpu.memory_space<vmem>>, vector<1x2x16xf32>
    %2 = vector.shape_cast %1 : vector<1x2x16xf32> to vector<2x16xf32>
    %3 = vector.extract_strided_slice %2 {offsets = [0, 0], sizes = [1, 16], strides = [1, 1]} : vector<2x16xf32> to vector<1x16xf32>
    %4 = vector.extract_strided_slice %2 {offsets = [1, 0], sizes = [1, 16], strides = [1, 1]} : vector<2x16xf32> to vector<1x16xf32>
    %5 = vector.extract_strided_slice %3 {offsets = [0, 15], sizes = [1, 1], strides = [1, 1]} : vector<1x16xf32> to vector<1x1xf32>
    %6 = vector.extract_strided_slice %3 {offsets = [0, 0], sizes = [1, 15], strides = [1, 1]} : vector<1x16xf32> to vector<1x15xf32>
    %7 = tpu.concatenate %5, %6 in 1 : vector<1x1xf32>, vector<1x15xf32> -> vector<1x16xf32>
    %c1 = arith.constant 1 : index
    %c0_2 = arith.constant 0 : index
    %8 = vector.load %arg6[%c1, %c0_2] : memref<3x16xf32, #tpu.memory_space<vmem>>, vector<1x16xf32>
    %9 = arith.mulf %7, %8 : vector<1x16xf32>
    %10 = vector.extract_strided_slice %3 {offsets = [0, 1], sizes = [1, 15], strides = [1, 1]} : vector<1x16xf32> to vector<1x15xf32>
    %11 = vector.extract_strided_slice %3 {offsets = [0, 0], sizes = [1, 1], strides = [1, 1]} : vector<1x16xf32> to vector<1x1xf32>
    %12 = tpu.concatenate %10, %11 in 1 : vector<1x15xf32>, vector<1x1xf32> -> vector<1x16xf32>
    %c2 = arith.constant 2 : index
    %c0_3 = arith.constant 0 : index
    %13 = vector.load %arg6[%c2, %c0_3] : memref<3x16xf32, #tpu.memory_space<vmem>>, vector<1x16xf32>
    %14 = arith.mulf %12, %13 : vector<1x16xf32>
    %15 = vector.extract_strided_slice %4 {offsets = [0, 14], sizes = [1, 2], strides = [1, 1]} : vector<1x16xf32> to vector<1x2xf32>
    %16 = vector.extract_strided_slice %4 {offsets = [0, 0], sizes = [1, 14], strides = [1, 1]} : vector<1x16xf32> to vector<1x14xf32>
    %17 = tpu.concatenate %15, %16 in 1 : vector<1x2xf32>, vector<1x14xf32> -> vector<1x16xf32>
    %c0_4 = arith.constant 0 : index
    %c0_5 = arith.constant 0 : index
    %18 = vector.load %arg6[%c0_4, %c0_5] : memref<3x16xf32, #tpu.memory_space<vmem>>, vector<1x16xf32>
    %19 = arith.mulf %17, %18 : vector<1x16xf32>
    %20 = vector.extract_strided_slice %4 {offsets = [0, 15], sizes = [1, 1], strides = [1, 1]} : vector<1x16xf32> to vector<1x1xf32>
    %21 = vector.extract_strided_slice %4 {offsets = [0, 0], sizes = [1, 15], strides = [1, 1]} : vector<1x16xf32> to vector<1x15xf32>
    %22 = tpu.concatenate %20, %21 in 1 : vector<1x1xf32>, vector<1x15xf32> -> vector<1x16xf32>
    %c1_6 = arith.constant 1 : index
    %c0_7 = arith.constant 0 : index
    %23 = vector.load %arg6[%c1_6, %c0_7] : memref<3x16xf32, #tpu.memory_space<vmem>>, vector<1x16xf32>
    %24 = arith.mulf %22, %23 : vector<1x16xf32>
    %25 = vector.extract_strided_slice %4 {offsets = [0, 1], sizes = [1, 15], strides = [1, 1]} : vector<1x16xf32> to vector<1x15xf32>
    %26 = vector.extract_strided_slice %4 {offsets = [0, 0], sizes = [1, 1], strides = [1, 1]} : vector<1x16xf32> to vector<1x1xf32>
    %27 = tpu.concatenate %25, %26 in 1 : vector<1x15xf32>, vector<1x1xf32> -> vector<1x16xf32>
    %c2_8 = arith.constant 2 : index
    %c0_9 = arith.constant 0 : index
    %28 = vector.load %arg6[%c2_8, %c0_9] : memref<3x16xf32, #tpu.memory_space<vmem>>, vector<1x16xf32>
    %29 = arith.mulf %27, %28 : vector<1x16xf32>
    %30 = tpu.concatenate %9, %3, %14, %19, %24, %4, %29, %0 in 0 : vector<1x16xf32>, vector<1x16xf32>, vector<1x16xf32>, vector<1x16xf32>, vector<1x16xf32>, vector<1x16xf32>, vector<1x16xf32>, vector<1x16xf32> -> vector<8x16xf32>
    %c0_10 = arith.constant 0 : index
    %c0_11 = arith.constant 0 : index
    %31 = vector.load %arg3[%c0_10, %c0_11] : memref<264x193xbf16, #tpu.memory_space<vmem>>, vector<16x8xbf16>
    %32 = arith.truncf %30 : vector<8x16xf32> to vector<8x16xbf16>
    %cst_12 = arith.constant dense<0.000000e+00> : vector<16x16xf32>
    %33 = tpu.matmul %31, %32, %cst_12 {dimension_numbers = #tpu.dot_dimension_numbers<[1], [0], [0], [1], [0, 0, 1, 1], [], []>} : vector<16x8xbf16>, vector<8x16xbf16>, vector<16x16xf32> -> vector<16x16xf32>
    %cst_13 = arith.constant 0.000000e+00 : f32
    %34 = vector.broadcast %cst_13 : f32 to vector<16x16xf32>
    %35 = arith.cmpf ogt, %33, %34 : vector<16x16xf32>
    %cst_14 = arith.constant 2.000000e-01 : f32
    %36 = vector.broadcast %cst_14 : f32 to vector<16x16xf32>
    %37 = arith.mulf %36, %33 : vector<16x16xf32>
    %38 = arith.select %35, %33, %37 : vector<16x16xi1>, vector<16x16xf32>
    %39 = vector.extract_strided_slice %38 {offsets = [0, 15], sizes = [16, 1], strides = [1, 1]} : vector<16x16xf32> to vector<16x1xf32>
    %40 = vector.extract_strided_slice %38 {offsets = [0, 0], sizes = [16, 15], strides = [1, 1]} : vector<16x16xf32> to vector<16x15xf32>
    %41 = tpu.concatenate %39, %40 in 1 : vector<16x1xf32>, vector<16x15xf32> -> vector<16x16xf32>
    %c1_15 = arith.constant 1 : index
    %c0_16 = arith.constant 0 : index
    %42 = vector.load %arg6[%c1_15, %c0_16] : memref<3x16xf32, #tpu.memory_space<vmem>>, vector<1x16xf32>
    %43 = vector.broadcast %42 : vector<1x16xf32> to vector<16x16xf32>
    %44 = arith.mulf %41, %43 : vector<16x16xf32>
    %45 = vector.extract_strided_slice %38 {offsets = [0, 1], sizes = [16, 15], strides = [1, 1]} : vector<16x16xf32> to vector<16x15xf32>
    %46 = vector.extract_strided_slice %38 {offsets = [0, 0], sizes = [16, 1], strides = [1, 1]} : vector<16x16xf32> to vector<16x1xf32>
    %47 = tpu.concatenate %45, %46 in 1 : vector<16x15xf32>, vector<16x1xf32> -> vector<16x16xf32>
    %c2_17 = arith.constant 2 : index
    %c0_18 = arith.constant 0 : index
    %48 = vector.load %arg6[%c2_17, %c0_18] : memref<3x16xf32, #tpu.memory_space<vmem>>, vector<1x16xf32>
    %49 = vector.broadcast %48 : vector<1x16xf32> to vector<16x16xf32>
    %50 = arith.mulf %47, %49 : vector<16x16xf32>
    %51 = tpu.concatenate %44, %38, %50, %0 in 0 : vector<16x16xf32>, vector<16x16xf32>, vector<16x16xf32>, vector<1x16xf32> -> vector<49x16xf32>
    %c16 = arith.constant 16 : index
    %c0_19 = arith.constant 0 : index
    %52 = vector.load %arg3[%c16, %c0_19] : memref<264x193xbf16, #tpu.memory_space<vmem>>, vector<32x49xbf16>
    %53 = arith.truncf %51 : vector<49x16xf32> to vector<49x16xbf16>
    %cst_20 = arith.constant dense<0.000000e+00> : vector<32x16xf32>
    %54 = tpu.matmul %52, %53, %cst_20 {dimension_numbers = #tpu.dot_dimension_numbers<[1], [0], [0], [1], [0, 0, 1, 1], [], []>} : vector<32x49xbf16>, vector<49x16xbf16>, vector<32x16xf32> -> vector<32x16xf32>
    %cst_21 = arith.constant 0.000000e+00 : f32
    %55 = vector.broadcast %cst_21 : f32 to vector<32x16xf32>
    %56 = arith.cmpf ogt, %54, %55 : vector<32x16xf32>
    %cst_22 = arith.constant 2.000000e-01 : f32
    %57 = vector.broadcast %cst_22 : f32 to vector<32x16xf32>
    %58 = arith.mulf %57, %54 : vector<32x16xf32>
    %59 = arith.select %56, %54, %58 : vector<32x16xi1>, vector<32x16xf32>
    %60 = tpu.concatenate %38, %0 in 0 : vector<16x16xf32>, vector<1x16xf32> -> vector<17x16xf32>
    %c48 = arith.constant 48 : index
    %c0_23 = arith.constant 0 : index
    %61 = vector.load %arg3[%c48, %c0_23] : memref<264x193xbf16, #tpu.memory_space<vmem>>, vector<32x17xbf16>
    %62 = arith.truncf %60 : vector<17x16xf32> to vector<17x16xbf16>
    %cst_24 = arith.constant dense<0.000000e+00> : vector<32x16xf32>
    %63 = tpu.matmul %61, %62, %cst_24 {dimension_numbers = #tpu.dot_dimension_numbers<[1], [0], [0], [1], [0, 0, 1, 1], [], []>} : vector<32x17xbf16>, vector<17x16xbf16>, vector<32x16xf32> -> vector<32x16xf32>
    %64 = arith.addf %59, %63 : vector<32x16xf32>
    %65 = vector.extract_strided_slice %64 {offsets = [0, 15], sizes = [32, 1], strides = [1, 1]} : vector<32x16xf32> to vector<32x1xf32>
    %66 = vector.extract_strided_slice %64 {offsets = [0, 0], sizes = [32, 15], strides = [1, 1]} : vector<32x16xf32> to vector<32x15xf32>
    %67 = tpu.concatenate %65, %66 in 1 : vector<32x1xf32>, vector<32x15xf32> -> vector<32x16xf32>
    %c1_25 = arith.constant 1 : index
    %c0_26 = arith.constant 0 : index
    %68 = vector.load %arg6[%c1_25, %c0_26] : memref<3x16xf32, #tpu.memory_space<vmem>>, vector<1x16xf32>
    %69 = vector.broadcast %68 : vector<1x16xf32> to vector<32x16xf32>
    %70 = arith.mulf %67, %69 : vector<32x16xf32>
    %71 = vector.extract_strided_slice %64 {offsets = [0, 1], sizes = [32, 15], strides = [1, 1]} : vector<32x16xf32> to vector<32x15xf32>
    %72 = vector.extract_strided_slice %64 {offsets = [0, 0], sizes = [32, 1], strides = [1, 1]} : vector<32x16xf32> to vector<32x1xf32>
    %73 = tpu.concatenate %71, %72 in 1 : vector<32x15xf32>, vector<32x1xf32> -> vector<32x16xf32>
    %c2_27 = arith.constant 2 : index
    %c0_28 = arith.constant 0 : index
    %74 = vector.load %arg6[%c2_27, %c0_28] : memref<3x16xf32, #tpu.memory_space<vmem>>, vector<1x16xf32>
    %75 = vector.broadcast %74 : vector<1x16xf32> to vector<32x16xf32>
    %76 = arith.mulf %73, %75 : vector<32x16xf32>
    %77 = tpu.concatenate %70, %64, %76, %0 in 0 : vector<32x16xf32>, vector<32x16xf32>, vector<32x16xf32>, vector<1x16xf32> -> vector<97x16xf32>
    %c80 = arith.constant 80 : index
    %c0_29 = arith.constant 0 : index
    %78 = vector.load %arg3[%c80, %c0_29] : memref<264x193xbf16, #tpu.memory_space<vmem>>, vector<64x97xbf16>
    %79 = arith.truncf %77 : vector<97x16xf32> to vector<97x16xbf16>
    %cst_30 = arith.constant dense<0.000000e+00> : vector<64x16xf32>
    %80 = tpu.matmul %78, %79, %cst_30 {dimension_numbers = #tpu.dot_dimension_numbers<[1], [0], [0], [1], [0, 0, 1, 1], [], []>} : vector<64x97xbf16>, vector<97x16xbf16>, vector<64x16xf32> -> vector<64x16xf32>
    %cst_31 = arith.constant 0.000000e+00 : f32
    %81 = vector.broadcast %cst_31 : f32 to vector<64x16xf32>
    %82 = arith.cmpf ogt, %80, %81 : vector<64x16xf32>
    %cst_32 = arith.constant 2.000000e-01 : f32
    %83 = vector.broadcast %cst_32 : f32 to vector<64x16xf32>
    %84 = arith.mulf %83, %80 : vector<64x16xf32>
    %85 = arith.select %82, %80, %84 : vector<64x16xi1>, vector<64x16xf32>
    %86 = vector.extract_strided_slice %85 {offsets = [0, 15], sizes = [64, 1], strides = [1, 1]} : vector<64x16xf32> to vector<64x1xf32>
    %87 = vector.extract_strided_slice %85 {offsets = [0, 0], sizes = [64, 15], strides = [1, 1]} : vector<64x16xf32> to vector<64x15xf32>
    %88 = tpu.concatenate %86, %87 in 1 : vector<64x1xf32>, vector<64x15xf32> -> vector<64x16xf32>
    %c1_33 = arith.constant 1 : index
    %c0_34 = arith.constant 0 : index
    %89 = vector.load %arg6[%c1_33, %c0_34] : memref<3x16xf32, #tpu.memory_space<vmem>>, vector<1x16xf32>
    %90 = vector.broadcast %89 : vector<1x16xf32> to vector<64x16xf32>
    %91 = arith.mulf %88, %90 : vector<64x16xf32>
    %92 = vector.extract_strided_slice %85 {offsets = [0, 1], sizes = [64, 15], strides = [1, 1]} : vector<64x16xf32> to vector<64x15xf32>
    %93 = vector.extract_strided_slice %85 {offsets = [0, 0], sizes = [64, 1], strides = [1, 1]} : vector<64x16xf32> to vector<64x1xf32>
    %94 = tpu.concatenate %92, %93 in 1 : vector<64x15xf32>, vector<64x1xf32> -> vector<64x16xf32>
    %c2_35 = arith.constant 2 : index
    %c0_36 = arith.constant 0 : index
    %95 = vector.load %arg6[%c2_35, %c0_36] : memref<3x16xf32, #tpu.memory_space<vmem>>, vector<1x16xf32>
    %96 = vector.broadcast %95 : vector<1x16xf32> to vector<64x16xf32>
    %97 = arith.mulf %94, %96 : vector<64x16xf32>
    %98 = tpu.concatenate %91, %85, %97, %0 in 0 : vector<64x16xf32>, vector<64x16xf32>, vector<64x16xf32>, vector<1x16xf32> -> vector<193x16xf32>
    %c144 = arith.constant 144 : index
    %c0_37 = arith.constant 0 : index
    %99 = vector.load %arg3[%c144, %c0_37] : memref<264x193xbf16, #tpu.memory_space<vmem>>, vector<32x193xbf16>
    %100 = arith.truncf %98 : vector<193x16xf32> to vector<193x16xbf16>
    %cst_38 = arith.constant dense<0.000000e+00> : vector<32x16xf32>
    %101 = tpu.matmul %99, %100, %cst_38 {dimension_numbers = #tpu.dot_dimension_numbers<[1], [0], [0], [1], [0, 0, 1, 1], [], []>} : vector<32x193xbf16>, vector<193x16xbf16>, vector<32x16xf32> -> vector<32x16xf32>
    %cst_39 = arith.constant 0.000000e+00 : f32
    %102 = vector.broadcast %cst_39 : f32 to vector<32x16xf32>
    %103 = arith.cmpf ogt, %101, %102 : vector<32x16xf32>
    %cst_40 = arith.constant 2.000000e-01 : f32
    %104 = vector.broadcast %cst_40 : f32 to vector<32x16xf32>
    %105 = arith.mulf %104, %101 : vector<32x16xf32>
    %106 = arith.select %103, %101, %105 : vector<32x16xi1>, vector<32x16xf32>
    %107 = tpu.concatenate %85, %0 in 0 : vector<64x16xf32>, vector<1x16xf32> -> vector<65x16xf32>
    %c176 = arith.constant 176 : index
    %c0_41 = arith.constant 0 : index
    %108 = vector.load %arg3[%c176, %c0_41] : memref<264x193xbf16, #tpu.memory_space<vmem>>, vector<32x65xbf16>
    %109 = arith.truncf %107 : vector<65x16xf32> to vector<65x16xbf16>
    %cst_42 = arith.constant dense<0.000000e+00> : vector<32x16xf32>
    %110 = tpu.matmul %108, %109, %cst_42 {dimension_numbers = #tpu.dot_dimension_numbers<[1], [0], [0], [1], [0, 0, 1, 1], [], []>} : vector<32x65xbf16>, vector<65x16xbf16>, vector<32x16xf32> -> vector<32x16xf32>
    %111 = arith.addf %106, %110 : vector<32x16xf32>
    %112 = vector.extract_strided_slice %111 {offsets = [0, 15], sizes = [32, 1], strides = [1, 1]} : vector<32x16xf32> to vector<32x1xf32>
    %113 = vector.extract_strided_slice %111 {offsets = [0, 0], sizes = [32, 15], strides = [1, 1]} : vector<32x16xf32> to vector<32x15xf32>
    %114 = tpu.concatenate %112, %113 in 1 : vector<32x1xf32>, vector<32x15xf32> -> vector<32x16xf32>
    %c1_43 = arith.constant 1 : index
    %c0_44 = arith.constant 0 : index
    %115 = vector.load %arg6[%c1_43, %c0_44] : memref<3x16xf32, #tpu.memory_space<vmem>>, vector<1x16xf32>
    %116 = vector.broadcast %115 : vector<1x16xf32> to vector<32x16xf32>
    %117 = arith.mulf %114, %116 : vector<32x16xf32>
    %118 = vector.extract_strided_slice %111 {offsets = [0, 1], sizes = [32, 15], strides = [1, 1]} : vector<32x16xf32> to vector<32x15xf32>
    %119 = vector.extract_strided_slice %111 {offsets = [0, 0], sizes = [32, 1], strides = [1, 1]} : vector<32x16xf32> to vector<32x1xf32>
    %120 = tpu.concatenate %118, %119 in 1 : vector<32x15xf32>, vector<32x1xf32> -> vector<32x16xf32>
    %c2_45 = arith.constant 2 : index
    %c0_46 = arith.constant 0 : index
    %121 = vector.load %arg6[%c2_45, %c0_46] : memref<3x16xf32, #tpu.memory_space<vmem>>, vector<1x16xf32>
    %122 = vector.broadcast %121 : vector<1x16xf32> to vector<32x16xf32>
    %123 = arith.mulf %120, %122 : vector<32x16xf32>
    %124 = tpu.concatenate %117, %111, %123, %0 in 0 : vector<32x16xf32>, vector<32x16xf32>, vector<32x16xf32>, vector<1x16xf32> -> vector<97x16xf32>
    %c208 = arith.constant 208 : index
    %c0_47 = arith.constant 0 : index
    %125 = vector.load %arg3[%c208, %c0_47] : memref<264x193xbf16, #tpu.memory_space<vmem>>, vector<16x97xbf16>
    %126 = arith.truncf %124 : vector<97x16xf32> to vector<97x16xbf16>
    %cst_48 = arith.constant dense<0.000000e+00> : vector<16x16xf32>
    %127 = tpu.matmul %125, %126, %cst_48 {dimension_numbers = #tpu.dot_dimension_numbers<[1], [0], [0], [1], [0, 0, 1, 1], [], []>} : vector<16x97xbf16>, vector<97x16xbf16>, vector<16x16xf32> -> vector<16x16xf32>
    %cst_49 = arith.constant 0.000000e+00 : f32
    %128 = vector.broadcast %cst_49 : f32 to vector<16x16xf32>
    %129 = arith.cmpf ogt, %127, %128 : vector<16x16xf32>
    %cst_50 = arith.constant 2.000000e-01 : f32
    %130 = vector.broadcast %cst_50 : f32 to vector<16x16xf32>
    %131 = arith.mulf %130, %127 : vector<16x16xf32>
    %132 = arith.select %129, %127, %131 : vector<16x16xi1>, vector<16x16xf32>
    %133 = vector.extract_strided_slice %132 {offsets = [0, 15], sizes = [16, 1], strides = [1, 1]} : vector<16x16xf32> to vector<16x1xf32>
    %134 = vector.extract_strided_slice %132 {offsets = [0, 0], sizes = [16, 15], strides = [1, 1]} : vector<16x16xf32> to vector<16x15xf32>
    %135 = tpu.concatenate %133, %134 in 1 : vector<16x1xf32>, vector<16x15xf32> -> vector<16x16xf32>
    %c1_51 = arith.constant 1 : index
    %c0_52 = arith.constant 0 : index
    %136 = vector.load %arg6[%c1_51, %c0_52] : memref<3x16xf32, #tpu.memory_space<vmem>>, vector<1x16xf32>
    %137 = vector.broadcast %136 : vector<1x16xf32> to vector<16x16xf32>
    %138 = arith.mulf %135, %137 : vector<16x16xf32>
    %139 = vector.extract_strided_slice %132 {offsets = [0, 1], sizes = [16, 15], strides = [1, 1]} : vector<16x16xf32> to vector<16x15xf32>
    %140 = vector.extract_strided_slice %132 {offsets = [0, 0], sizes = [16, 1], strides = [1, 1]} : vector<16x16xf32> to vector<16x1xf32>
    %141 = tpu.concatenate %139, %140 in 1 : vector<16x15xf32>, vector<16x1xf32> -> vector<16x16xf32>
    %c2_53 = arith.constant 2 : index
    %c0_54 = arith.constant 0 : index
    %142 = vector.load %arg6[%c2_53, %c0_54] : memref<3x16xf32, #tpu.memory_space<vmem>>, vector<1x16xf32>
    %143 = vector.broadcast %142 : vector<1x16xf32> to vector<16x16xf32>
    %144 = arith.mulf %141, %143 : vector<16x16xf32>
    %145 = tpu.concatenate %138, %132, %144, %0 in 0 : vector<16x16xf32>, vector<16x16xf32>, vector<16x16xf32>, vector<1x16xf32> -> vector<49x16xf32>
    %c224 = arith.constant 224 : index
    %c0_55 = arith.constant 0 : index
    %146 = vector.load %arg3[%c224, %c0_55] : memref<264x193xbf16, #tpu.memory_space<vmem>>, vector<8x49xbf16>
    %147 = arith.truncf %145 : vector<49x16xf32> to vector<49x16xbf16>
    %cst_56 = arith.constant dense<0.000000e+00> : vector<8x16xf32>
    %148 = tpu.matmul %146, %147, %cst_56 {dimension_numbers = #tpu.dot_dimension_numbers<[1], [0], [0], [1], [0, 0, 1, 1], [], []>} : vector<8x49xbf16>, vector<49x16xbf16>, vector<8x16xf32> -> vector<8x16xf32>
    %cst_57 = arith.constant 0.000000e+00 : f32
    %149 = vector.broadcast %cst_57 : f32 to vector<8x16xf32>
    %150 = arith.cmpf ogt, %148, %149 : vector<8x16xf32>
    %cst_58 = arith.constant 2.000000e-01 : f32
    %151 = vector.broadcast %cst_58 : f32 to vector<8x16xf32>
    %152 = arith.mulf %151, %148 : vector<8x16xf32>
    %153 = arith.select %150, %148, %152 : vector<8x16xi1>, vector<8x16xf32>
    %154 = tpu.concatenate %153, %0 in 0 : vector<8x16xf32>, vector<1x16xf32> -> vector<9x16xf32>
    %c232 = arith.constant 232 : index
    %c0_59 = arith.constant 0 : index
    %155 = vector.load %arg3[%c232, %c0_59] : memref<264x193xbf16, #tpu.memory_space<vmem>>, vector<1x9xbf16>
    %156 = arith.truncf %154 : vector<9x16xf32> to vector<9x16xbf16>
    %cst_60 = arith.constant dense<0.000000e+00> : vector<1x16xf32>
    %157 = tpu.matmul %155, %156, %cst_60 {dimension_numbers = #tpu.dot_dimension_numbers<[1], [0], [0], [1], [0, 0, 1, 1], [], []>} : vector<1x9xbf16>, vector<9x16xbf16>, vector<1x16xf32> -> vector<1x16xf32>
    %158 = tpu.concatenate %153, %0 in 0 : vector<8x16xf32>, vector<1x16xf32> -> vector<9x16xf32>
    %c240 = arith.constant 240 : index
    %c0_61 = arith.constant 0 : index
    %159 = vector.load %arg3[%c240, %c0_61] : memref<264x193xbf16, #tpu.memory_space<vmem>>, vector<1x9xbf16>
    %160 = arith.truncf %158 : vector<9x16xf32> to vector<9x16xbf16>
    %cst_62 = arith.constant dense<0.000000e+00> : vector<1x16xf32>
    %161 = tpu.matmul %159, %160, %cst_62 {dimension_numbers = #tpu.dot_dimension_numbers<[1], [0], [0], [1], [0, 0, 1, 1], [], []>} : vector<1x9xbf16>, vector<9x16xbf16>, vector<1x16xf32> -> vector<1x16xf32>
    %162 = tpu.concatenate %153, %0 in 0 : vector<8x16xf32>, vector<1x16xf32> -> vector<9x16xf32>
    %c248 = arith.constant 248 : index
    %c0_63 = arith.constant 0 : index
    %163 = vector.load %arg3[%c248, %c0_63] : memref<264x193xbf16, #tpu.memory_space<vmem>>, vector<8x9xbf16>
    %164 = arith.truncf %162 : vector<9x16xf32> to vector<9x16xbf16>
    %cst_64 = arith.constant dense<0.000000e+00> : vector<8x16xf32>
    %165 = tpu.matmul %163, %164, %cst_64 {dimension_numbers = #tpu.dot_dimension_numbers<[1], [0], [0], [1], [0, 0, 1, 1], [], []>} : vector<8x9xbf16>, vector<9x16xbf16>, vector<8x16xf32> -> vector<8x16xf32>
    %166 = vector.extract_strided_slice %161 {offsets = [0, 0], sizes = [1, 8], strides = [1, 1]} : vector<1x16xf32> to vector<1x8xf32>
    %167 = vector.shape_cast %166 : vector<1x8xf32> to vector<1x8xf32>
    %168 = vector.broadcast %167 : vector<1x8xf32> to vector<8x8xf32>
    %169 = vector.extract_strided_slice %161 {offsets = [0, 8], sizes = [1, 8], strides = [1, 1]} : vector<1x16xf32> to vector<1x8xf32>
    %170 = vector.shape_cast %169 : vector<1x8xf32> to vector<1x8xf32>
    %171 = vector.broadcast %170 : vector<1x8xf32> to vector<8x8xf32>
    %172 = tpu.concatenate %168, %171 in 0 : vector<8x8xf32>, vector<8x8xf32> -> vector<16x8xf32>
    %173 = tpu.transpose %157, [1, 0] : vector<1x16xf32> -> vector<16x1xf32>
    %174 = vector.broadcast %173 : vector<16x1xf32> to vector<16x8xf32>
    %175 = arith.mulf %174, %172 : vector<16x8xf32>
    %cst_65 = arith.constant dense<0xFF800000> : vector<16xf32>
    %176 = vector.multi_reduction <maximumf>, %175, %cst_65 [1] : vector<16x8xf32> to vector<16xf32>
    %177 = vector.shape_cast %176 : vector<16xf32> to vector<16x1xf32>
    %178 = vector.broadcast %177 : vector<16x1xf32> to vector<16x8xf32>
    %179 = arith.subf %175, %178 : vector<16x8xf32>
    %180 = math.exp %179 : vector<16x8xf32>
    %cst_66 = arith.constant dense<0.000000e+00> : vector<16xf32>
    %181 = vector.multi_reduction <add>, %180, %cst_66 [1] : vector<16x8xf32> to vector<16xf32>
    %182 = vector.shape_cast %181 : vector<16xf32> to vector<16x1xf32>
    %183 = vector.broadcast %182 : vector<16x1xf32> to vector<16x8xf32>
    %184 = arith.divf %180, %183 : vector<16x8xf32>
    %185 = tpu.transpose %184, [1, 0] : vector<16x8xf32> -> vector<8x16xf32>
    %186 = tpu.concatenate %185, %185 in 0 : vector<8x16xf32>, vector<8x16xf32> -> vector<16x16xf32>
    %c0_67 = arith.constant 0 : index
    %c0_68 = arith.constant 0 : index
    %187 = vector.load %arg8[%c0_67, %c0_68] : memref<16x16xf32, #tpu.memory_space<vmem>>, vector<16x16xf32>
    %188 = arith.mulf %186, %187 : vector<16x16xf32>
    %cst_69 = arith.constant dense<0.000000e+00> : vector<8x16xf32>
    %189 = tpu.matmul %165, %188, %cst_69 {dimension_numbers = #tpu.dot_dimension_numbers<[1], [0], [0], [1], [0, 0, 1, 1], [], []>} : vector<8x16xf32>, vector<16x16xf32>, vector<8x16xf32> -> vector<8x16xf32>
    %c0_70 = arith.constant 0 : index
    %c129 = arith.constant 129 : index
    %190 = vector.load %arg5[%c0_70, %c129] : memref<1x192xf32, #tpu.memory_space<vmem>>, vector<1x1xf32>
    %191 = vector.broadcast %190 : vector<1x1xf32> to vector<8x16xf32>
    %192 = arith.mulf %191, %189 : vector<8x16xf32>
    %193 = arith.addf %192, %153 : vector<8x16xf32>
    %194 = vector.extract_strided_slice %193 {offsets = [0, 15], sizes = [8, 1], strides = [1, 1]} : vector<8x16xf32> to vector<8x1xf32>
    %195 = vector.extract_strided_slice %193 {offsets = [0, 0], sizes = [8, 15], strides = [1, 1]} : vector<8x16xf32> to vector<8x15xf32>
    %196 = tpu.concatenate %194, %195 in 1 : vector<8x1xf32>, vector<8x15xf32> -> vector<8x16xf32>
    %c1_71 = arith.constant 1 : index
    %c0_72 = arith.constant 0 : index
    %197 = vector.load %arg6[%c1_71, %c0_72] : memref<3x16xf32, #tpu.memory_space<vmem>>, vector<1x16xf32>
    %198 = vector.broadcast %197 : vector<1x16xf32> to vector<8x16xf32>
    %199 = arith.mulf %196, %198 : vector<8x16xf32>
    %200 = vector.extract_strided_slice %193 {offsets = [0, 1], sizes = [8, 15], strides = [1, 1]} : vector<8x16xf32> to vector<8x15xf32>
    %201 = vector.extract_strided_slice %193 {offsets = [0, 0], sizes = [8, 1], strides = [1, 1]} : vector<8x16xf32> to vector<8x1xf32>
    %202 = tpu.concatenate %200, %201 in 1 : vector<8x15xf32>, vector<8x1xf32> -> vector<8x16xf32>
    %c2_73 = arith.constant 2 : index
    %c0_74 = arith.constant 0 : index
    %203 = vector.load %arg6[%c2_73, %c0_74] : memref<3x16xf32, #tpu.memory_space<vmem>>, vector<1x16xf32>
    %204 = vector.broadcast %203 : vector<1x16xf32> to vector<8x16xf32>
    %205 = arith.mulf %202, %204 : vector<8x16xf32>
    %206 = tpu.concatenate %199, %193, %205, %0 in 0 : vector<8x16xf32>, vector<8x16xf32>, vector<8x16xf32>, vector<1x16xf32> -> vector<25x16xf32>
    %c256 = arith.constant 256 : index
    %c0_75 = arith.constant 0 : index
    %207 = vector.load %arg3[%c256, %c0_75] : memref<264x193xbf16, #tpu.memory_space<vmem>>, vector<1x25xbf16>
    %208 = arith.truncf %206 : vector<25x16xf32> to vector<25x16xbf16>
    %cst_76 = arith.constant dense<0.000000e+00> : vector<1x16xf32>
    %209 = tpu.matmul %207, %208, %cst_76 {dimension_numbers = #tpu.dot_dimension_numbers<[1], [0], [0], [1], [0, 0, 1, 1], [], []>} : vector<1x25xbf16>, vector<25x16xbf16>, vector<1x16xf32> -> vector<1x16xf32>
    %c0_77 = arith.constant 0 : index
    %c0_78 = arith.constant 0 : index
    %210 = vector.load %arg7[%c0_77, %c0_78] : memref<2x16xf32, #tpu.memory_space<vmem>>, vector<2x16xf32>
    %211 = vector.broadcast %209 : vector<1x16xf32> to vector<2x16xf32>
    %212 = arith.mulf %210, %211 : vector<2x16xf32>
    %cst_79 = arith.constant dense<0.000000e+00> : vector<2xf32>
    %213 = vector.multi_reduction <add>, %212, %cst_79 [1] : vector<2x16xf32> to vector<2xf32>
    %214 = vector.shape_cast %213 : vector<2xf32> to vector<2x1xf32>
    %cst_80 = arith.constant 1.000000e+00 : f32
    %215 = vector.broadcast %cst_80 : f32 to vector<2x1xf32>
    %c0_81 = arith.constant 0 : index
    %c0_82 = arith.constant 0 : index
    %c0_83 = arith.constant 0 : index
    %216 = vector.load %arg2[%c0_81, %c0_82, %c0_83] : memref<1x2x6xf32, #tpu.memory_space<vmem>>, vector<1x2x6xf32>
    %217 = vector.shape_cast %216 : vector<1x2x6xf32> to vector<2x6xf32>
    %218 = tpu.concatenate %214, %217, %215 in 1 : vector<2x1xf32>, vector<2x6xf32>, vector<2x1xf32> -> vector<2x8xf32>
    %219 = arith.truncf %218 : vector<2x8xf32> to vector<2x8xbf16>
    %c0_84 = arith.constant 0 : index
    %c0_85 = arith.constant 0 : index
    %220 = vector.load %arg4[%c0_84, %c0_85] : memref<136x128xbf16, #tpu.memory_space<vmem>>, vector<8x128xbf16>
    %cst_86 = arith.constant dense<0.000000e+00> : vector<2x128xf32>
    %221 = tpu.matmul %219, %220, %cst_86 {dimension_numbers = #tpu.dot_dimension_numbers<[1], [0], [0], [1], [0, 0, 1, 1], [], []>} : vector<2x8xbf16>, vector<8x128xbf16>, vector<2x128xf32> -> vector<2x128xf32>
    %cst_87 = arith.constant 0.000000e+00 : f32
    %222 = vector.broadcast %cst_87 : f32 to vector<2x128xf32>
    %223 = arith.cmpf ogt, %221, %222 : vector<2x128xf32>
    %cst_88 = arith.constant 2.000000e-01 : f32
    %224 = vector.broadcast %cst_88 : f32 to vector<2x128xf32>
    %225 = arith.mulf %224, %221 : vector<2x128xf32>
    %226 = arith.select %223, %221, %225 : vector<2x128xi1>, vector<2x128xf32>
    %227 = arith.truncf %226 : vector<2x128xf32> to vector<2x128xbf16>
    %c8 = arith.constant 8 : index
    %c0_89 = arith.constant 0 : index
    %228 = vector.load %arg4[%c8, %c0_89] : memref<136x128xbf16, #tpu.memory_space<vmem>>, vector<128x64xbf16>
    %cst_90 = arith.constant dense<0.000000e+00> : vector<2x64xf32>
    %229 = tpu.matmul %227, %228, %cst_90 {dimension_numbers = #tpu.dot_dimension_numbers<[1], [0], [0], [1], [0, 0, 1, 1], [], []>} : vector<2x128xbf16>, vector<128x64xbf16>, vector<2x64xf32> -> vector<2x64xf32>
    %c0_91 = arith.constant 0 : index
    %c0_92 = arith.constant 0 : index
    %230 = vector.load %arg5[%c0_91, %c0_92] : memref<1x192xf32, #tpu.memory_space<vmem>>, vector<1x64xf32>
    %231 = vector.broadcast %230 : vector<1x64xf32> to vector<2x64xf32>
    %232 = arith.addf %229, %231 : vector<2x64xf32>
    %cst_93 = arith.constant 0.000000e+00 : f32
    %233 = vector.broadcast %cst_93 : f32 to vector<2x64xf32>
    %234 = arith.cmpf ogt, %232, %233 : vector<2x64xf32>
    %cst_94 = arith.constant 2.000000e-01 : f32
    %235 = vector.broadcast %cst_94 : f32 to vector<2x64xf32>
    %236 = arith.mulf %235, %232 : vector<2x64xf32>
    %237 = arith.select %234, %232, %236 : vector<2x64xi1>, vector<2x64xf32>
    %c0_95 = arith.constant 0 : index
    %c64 = arith.constant 64 : index
    %238 = vector.load %arg5[%c0_95, %c64] : memref<1x192xf32, #tpu.memory_space<vmem>>, vector<1x64xf32>
    %239 = vector.broadcast %238 : vector<1x64xf32> to vector<2x64xf32>
    %240 = arith.mulf %237, %239 : vector<2x64xf32>
    %cst_96 = arith.constant dense<0.000000e+00> : vector<2xf32>
    %241 = vector.multi_reduction <add>, %240, %cst_96 [1] : vector<2x64xf32> to vector<2xf32>
    %242 = vector.shape_cast %241 : vector<2xf32> to vector<2x1xf32>
    %c0_97 = arith.constant 0 : index
    %c128 = arith.constant 128 : index
    %243 = vector.load %arg5[%c0_97, %c128] : memref<1x192xf32, #tpu.memory_space<vmem>>, vector<1x1xf32>
    %244 = vector.broadcast %243 : vector<1x1xf32> to vector<2x1xf32>
    %245 = arith.addf %242, %244 : vector<2x1xf32>
    %246 = math.absf %245 : vector<2x1xf32>
    %cst_98 = arith.constant 0.000000e+00 : f32
    %247 = vector.broadcast %cst_98 : f32 to vector<2x1xf32>
    %248 = arith.subf %247, %246 : vector<2x1xf32>
    %249 = math.exp %248 : vector<2x1xf32>
    %cst_99 = arith.constant 1.000000e+00 : f32
    %250 = vector.broadcast %cst_99 : f32 to vector<2x1xf32>
    %251 = arith.addf %250, %249 : vector<2x1xf32>
    %cst_100 = arith.constant 1.000000e+00 : f32
    %252 = vector.broadcast %cst_100 : f32 to vector<2x1xf32>
    %253 = arith.divf %252, %251 : vector<2x1xf32>
    %cst_101 = arith.constant 0.000000e+00 : f32
    %254 = vector.broadcast %cst_101 : f32 to vector<2x1xf32>
    %255 = arith.cmpf oge, %245, %254 : vector<2x1xf32>
    %256 = arith.mulf %249, %253 : vector<2x1xf32>
    %257 = arith.select %255, %253, %256 : vector<2x1xi1>, vector<2x1xf32>
    %258 = tpu.transpose %257, [1, 0] : vector<2x1xf32> -> vector<1x2xf32>
    %c0_102 = arith.constant 0 : index
    %c0_103 = arith.constant 0 : index
    %c0_104 = arith.constant 0 : index
    %259 = vector.load %arg9[%c0_102, %c0_103, %c0_104] : memref<1x1x2xf32, #tpu.memory_space<vmem>>, vector<1x1x2xf32>
    %260 = vector.shape_cast %259 : vector<1x1x2xf32> to vector<1x2xf32>
    %261 = vector.shape_cast %258 : vector<1x2xf32> to vector<1x1x2xf32>
    tpu.vector_store %arg9[%c0_102, %c0_103, %c0_104], %261 {strides = array<i32>} : memref<1x1x2xf32, #tpu.memory_space<vmem>>, vector<1x1x2xf32>,
    return
  }
  func.func @transform_0(%arg0: i32) -> (i32, i32, i32) {
    %c0_i32 = arith.constant 0 : i32
    %c0_i32_0 = arith.constant 0 : i32
    %c0_i32_1 = arith.constant 0 : i32
    return %arg0, %c0_i32, %c0_i32_0 : i32, i32, i32
  }
  func.func @transform_1(%arg0: i32) -> (i32, i32, i32) {
    %c0_i32 = arith.constant 0 : i32
    %c0_i32_0 = arith.constant 0 : i32
    %c0_i32_1 = arith.constant 0 : i32
    return %arg0, %c0_i32, %c0_i32_0 : i32, i32, i32
  }
  func.func @transform_2(%arg0: i32) -> (i32, i32) {
    %c0_i32 = arith.constant 0 : i32
    %c0_i32_0 = arith.constant 0 : i32
    %c0_i32_1 = arith.constant 0 : i32
    return %c0_i32, %c0_i32_0 : i32, i32
  }
  func.func @transform_3(%arg0: i32) -> (i32, i32) {
    %c0_i32 = arith.constant 0 : i32
    %c0_i32_0 = arith.constant 0 : i32
    %c0_i32_1 = arith.constant 0 : i32
    return %c0_i32, %c0_i32_0 : i32, i32
  }
  func.func @transform_4(%arg0: i32) -> (i32, i32) {
    %c0_i32 = arith.constant 0 : i32
    %c0_i32_0 = arith.constant 0 : i32
    %c0_i32_1 = arith.constant 0 : i32
    return %c0_i32, %c0_i32_0 : i32, i32
  }
  func.func @transform_5(%arg0: i32) -> (i32, i32) {
    %c0_i32 = arith.constant 0 : i32
    %c0_i32_0 = arith.constant 0 : i32
    %c0_i32_1 = arith.constant 0 : i32
    return %c0_i32, %c0_i32_0 : i32, i32
  }
  func.func @transform_6(%arg0: i32) -> (i32, i32) {
    %c0_i32 = arith.constant 0 : i32
    %c0_i32_0 = arith.constant 0 : i32
    %c0_i32_1 = arith.constant 0 : i32
    return %c0_i32, %c0_i32_0 : i32, i32
  }
  func.func @transform_7(%arg0: i32) -> (i32, i32) {
    %c0_i32 = arith.constant 0 : i32
    %c0_i32_0 = arith.constant 0 : i32
    %c0_i32_1 = arith.constant 0 : i32
    return %c0_i32, %c0_i32_0 : i32, i32
  }
  func.func @transform_8(%arg0: i32) -> (i32, i32, i32) {
    %c0_i32 = arith.constant 0 : i32
    %c0_i32_0 = arith.constant 0 : i32
    %c0_i32_1 = arith.constant 0 : i32
    return %arg0, %c0_i32, %c0_i32_0 : i32, i32, i32
  }
}

</mosaic_0001>

<llo_original>
// kernel: discriminator_forward.1
$region0: #{discriminator_forward.1}
  #allocation0 [shape = 'u32[]', space=smem, size = 0x4, offset = 0x4, fixed_abs, tag = 'smem constant byte address 0x4 - core index']
  #allocation1 [shape = 'u32[72,128]{1,0:T(1,128)}', space=vmem, size = 0x9000, scoped, tag = 'internal scratch']
  %s0 = inlined_call_operand.vmem [shape: f32[1,2,16], index: 0, kind: input, shape index: {}]
  %s1 = inlined_call_operand.vmem [shape: f32[1,2,6], index: 1, kind: input, shape index: {}]
  %s2 = inlined_call_operand.hbm [shape: bf16[264,193], index: 2, kind: input, shape index: {}]
  %s3 = inlined_call_operand.hbm [shape: bf16[136,128], index: 3, kind: input, shape index: {}]
  %s4 = inlined_call_operand.vmem [shape: f32[1,192], index: 4, kind: input, shape index: {}]
  %s5 = inlined_call_operand.vmem [shape: f32[3,16], index: 5, kind: input, shape index: {}]
  %s6 = inlined_call_operand.vmem [shape: f32[2,16], index: 6, kind: input, shape index: {}]
  %s7 = inlined_call_operand.hbm [shape: f32[16,16], index: 7, kind: input, shape index: {}]
  %s8 = inlined_call_operand.hbm [shape: f32[1,1,2], index: 8, kind: output, shape index: {}]
  %s9 = sld [smem:[#allocation0]]
  $region54: #{discriminator_forward.1} parent=0
    _
  %s11 = ssub.s32 1, %s9
  %s12 = scalar_select 0, %s11, %s9
  $region1: #{discriminator_forward.1} parent=0
    #allocation2 [shape = 'u8[135168]{0}', space=vmem, size = 0x21000, scoped, tag = 'input window, operand 2, single buffered']
    #allocation3 [shape = 's32[1]{0}', space=sflag, size = 0x4, scoped, tag = 'scoped memory for discriminator_forward.1']
    #allocation4 [shape = 's32[1]{0}', space=sflag, size = 0x4, scoped, tag = 'scoped memory for discriminator_forward.1']
    #allocation5 [shape = 'u8[34816]{0}', space=vmem, size = 0x8800, scoped, tag = 'input window, operand 3, single buffered']
    #allocation6 [shape = 's32[1]{0}', space=sflag, size = 0x4, scoped, tag = 'scoped memory for discriminator_forward.1']
    #allocation7 [shape = 'u8[8192]{0}', space=vmem, size = 0x2000, scoped, tag = 'input window, operand 7, single buffered']
    #allocation8 [shape = 'u8[512]{0}', space=vmem, size = 0x400, scoped, tag = 'output window, operand 0, single buffered']
    %13 = vsyncpa [#allocation3], 0
    %14 = vsyncpa [#allocation6], 0
    %15 = vsyncpa [#allocation4], 0
    // Predicated region
    $region2: #{discriminator_forward.1} parent=1 // pred_check
      _
    $region3: #{discriminator_forward.1} parent=1 // pred_check_branch
      %17 = sbr.rel (0) target = $region5
    $region4: #{discriminator_forward.1} parent=1 // pred_region
      _
    $region5: #{discriminator_forward.1} parent=1 // pred_fallthru
      _
    // Predicated region
    $region6: #{discriminator_forward.1} parent=1 // pred_check
      _
    $region7: #{discriminator_forward.1} parent=1 // pred_check_branch
      %19 = sbr.rel (0) target = $region9
    $region8: #{discriminator_forward.1} parent=1 // pred_region
      _
    $region9: #{discriminator_forward.1} parent=1 // pred_fallthru
      _
    // Predicated region
    $region10: #{discriminator_forward.1} parent=1 // pred_check
      _
    $region11: #{discriminator_forward.1} parent=1 // pred_check_branch
      %21 = sbr.rel (0) target = $region13
    $region12: #{discriminator_forward.1} parent=1 // pred_region
      %23 = vsyncadd [#allocation3], 0
      %s24 = sshll.u32 %s2, 4
      %s25 = int_to_ptr.hbm [resolvable:$true] %s24
      %s26 = sshll.u32 [#allocation2], 4
      %s27 = int_to_ptr.vmem [resolvable:$true] %s26
      %32 = dma.hbm_to_vmem [thread:$0]  %s25, 4224, %s27, [#allocation3], 128, 128, 8
    $region13: #{discriminator_forward.1} parent=1 // pred_fallthru
      _
    // Predicated region
    $region14: #{discriminator_forward.1} parent=1 // pred_check
      _
    $region15: #{discriminator_forward.1} parent=1 // pred_check_branch
      %34 = sbr.rel (0) target = $region17
    $region16: #{discriminator_forward.1} parent=1 // pred_region
      %36 = vsyncadd [#allocation6], 0
      %s37 = sshll.u32 %s3, 4
      %s38 = int_to_ptr.hbm [resolvable:$true] %s37
      %s39 = sshll.u32 [#allocation5], 4
      %s40 = int_to_ptr.vmem [resolvable:$true] %s39
      %45 = dma.hbm_to_vmem [thread:$0]  %s38, 1088, %s40, [#allocation6], 64, 64, 4
    $region17: #{discriminator_forward.1} parent=1 // pred_fallthru
      _
    // Predicated region
    $region18: #{discriminator_forward.1} parent=1 // pred_check
      _
    $region19: #{discriminator_forward.1} parent=1 // pred_check_branch
      %47 = sbr.rel (0) target = $region21
    $region20: #{discriminator_forward.1} parent=1 // pred_region
      _
    $region21: #{discriminator_forward.1} parent=1 // pred_fallthru
      _
    // Predicated region
    $region22: #{discriminator_forward.1} parent=1 // pred_check
      _
    $region23: #{discriminator_forward.1} parent=1 // pred_check_branch
      %49 = sbr.rel (0) target = $region25
    $region24: #{discriminator_forward.1} parent=1 // pred_region
      _
    $region25: #{discriminator_forward.1} parent=1 // pred_fallthru
      _
    // Predicated region
    $region26: #{discriminator_forward.1} parent=1 // pred_check
      _
    $region27: #{discriminator_forward.1} parent=1 // pred_check_branch
      %51 = sbr.rel (0) target = $region29
    $region28: #{discriminator_forward.1} parent=1 // pred_region
      _
    $region29: #{discriminator_forward.1} parent=1 // pred_fallthru
      _
    // Predicated region
    $region30: #{discriminator_forward.1} parent=1 // pred_check
      _
    $region31: #{discriminator_forward.1} parent=1 // pred_check_branch
      %53 = sbr.rel (0) target = $region33
    $region32: #{discriminator_forward.1} parent=1 // pred_region
      %55 = vsyncadd [#allocation6], 0
      %s56 = sshll.u32 %s7, 4
      %s57 = int_to_ptr.hbm [resolvable:$true] %s56
      %s58 = sshll.u32 [#allocation7], 4
      %s59 = int_to_ptr.vmem [resolvable:$true] %s58
      %64 = dma.hbm_to_vmem [thread:$0]  %s57, 256, %s59, [#allocation6], 128, 128, 8
    $region33: #{discriminator_forward.1} parent=1 // pred_fallthru
      _
    // Predicated region
    $region34: #{discriminator_forward.1} parent=1 // pred_check
      _
    $region35: #{discriminator_forward.1} parent=1 // pred_check_branch
      %66 = sbr.rel (0) target = $region37
    $region36: #{discriminator_forward.1} parent=1 // pred_region
      %68 = dma.done [#allocation3], 4224
    $region37: #{discriminator_forward.1} parent=1 // pred_fallthru
      _
    // Predicated region
    $region38: #{discriminator_forward.1} parent=1 // pred_check
      _
    $region39: #{discriminator_forward.1} parent=1 // pred_check_branch
      %70 = sbr.rel (0) target = $region41
    $region40: #{discriminator_forward.1} parent=1 // pred_region
      %72 = dma.done [#allocation6], 1088
    $region41: #{discriminator_forward.1} parent=1 // pred_fallthru
      _
    // Predicated region
    $region42: #{discriminator_forward.1} parent=1 // pred_check
      _
    $region43: #{discriminator_forward.1} parent=1 // pred_check_branch
      %74 = sbr.rel (0) target = $region45
    $region44: #{discriminator_forward.1} parent=1 // pred_region
      %76 = dma.done [#allocation6], 256
    $region45: #{discriminator_forward.1} parent=1 // pred_fallthru
      _
    %v78 = vld [vmem:[%s0] sm:$0x3]
    %80 = vrot.lane.b32.xlu0 %v78, 113
    %v81 = vpop.permute.xlu0 %80
    %83 = vrot.lane.b32.xlu0 %v78, 1
    %v84 = vpop.permute.xlu0 %83
    %vm86 = vcmask 7168
    %v87 = vsel %vm86, %v81, %v84
    %v88 = vld [vmem:[%s5 + $0x1] sm:$0x1]
    %v89 = vmul.f32 %v87, %v88
    %90 = vrot.lane.b32.xlu0 %v78, 127
    %v91 = vpop.permute.xlu0 %90
    %93 = vrot.lane.b32.xlu0 %v78, 15
    %v94 = vpop.permute.xlu0 %93
    %vm96 = vcmask 121856
    %v97 = vsel %vm96, %v91, %v94
    %v98 = vld [vmem:[%s5 + $0x2] sm:$0x1]
    %v99 = vmul.f32 %v97, %v98
    %100 = vrot.lane.b32.xlu0 %v78, 114
    %v101 = vpop.permute.xlu0 %100
    %103 = vrot.lane.b32.xlu0 %v78, 2
    %v104 = vpop.permute.xlu0 %103
    %vm106 = vcmask 15360
    %v107 = vsel %vm106, %v101, %v104
    %v108 = vld [vmem:[%s5] sm:$0x1]
    %v110 = vrot.slane %v108, 7
    %v112 = vmul.f32 %v107, %v110
    %v114 = vrot.slane %v88, 7
    %v116 = vmul.f32 %v87, %v114
    %v118 = vrot.slane %v98, 7
    %v120 = vmul.f32 %v97, %v118
    %v121 = vrot.slane %v78, 7
    %v124 = vrot.slane %v99, 6
    %v127 = vrot.slane %v112, 6
    %v130 = vrot.slane %v116, 5
    %v132 = vrot.slane %v78, 4
    %v135 = vrot.slane %v120, 3
    %vm137 = vcmask 1040384
    %v138 = vsel %vm137, %v89, %v121
    %vm139 = vcmask 1041408
    %v140 = vsel %vm139, %v138, %v124
    %vm141 = vcmask 1042432
    %v142 = vsel %vm141, %v140, %v127
    %vm143 = vcmask 1043456
    %v144 = vsel %vm143, %v142, %v130
    %vm145 = vcmask 1044480
    %v146 = vsel %vm145, %v144, %v132
    %vm147 = vcmask 1045504
    %v148 = vsel %vm147, %v146, %v135
    %vm149 = vcmask 1046528
    %v150 = vsel %vm149, %v148, 1.0
    %v151 = vld [vmem:[#allocation2] sm:$0xf]
    %v152 = vld [vmem:[#allocation2 + $0x8] sm:$0xf]
    %v153 = vpack.c.bf16 %v150, %v150
    %v156 = vunpack.c.l.b16 %v151
    %v157 = vunpack.c.l.b16 %v152
    %v158 = vpack.c.b16 %v157, %v156
    %vm159 = vcmask 64512
    %v161 = vsel %vm159, %v158, 0
    %v164 = vsel %vm143, %v153, 0
    %166 = vmatpush.bf16.msra.mxu0 0
    %167 = vmatpush.bf16.msra.mxu0 0
    %168 = vmatpush.bf16.msra.mxu0 0
    %169 = vmatpush.bf16.msra.mxu0 0
    %170 = vmatpush.bf16.msra.mxu0 0
    %171 = vmatpush.bf16.msra.mxu0 0
    %172 = vmatpush.bf16.msra.mxu0 0
    %173 = vmatpush.bf16.msra.mxu0 %v164
    %174 = vmatmul.bf16.gmra.mxu0 %v161
    %v175 = vpop.f32.mrf.mxu0
    %v176 = vadd.f32 0.0, %v175
    %v177 = vpop.f32.mrf.mxu0
    %v178 = vadd.f32 0.0, %v177
    %179 = vdwg.mxu0
    %vm180 = vcmp.gt.f32.partialorder %v176, 0.0
    %vm181 = vcmp.gt.f32.partialorder %v178, 0.0
    %v182 = vmul.f32 %v176, 0.2
    %v183 = vmul.f32 %v178, 0.2
    %v184 = vsel %vm180, %v176, %v182
    %v185 = vsel %vm181, %v178, %v183
    %188 = vrot.lane.b32.xlu0 %v184, 113
    %v189 = vpop.permute.xlu0 %188
    %190 = vrot.lane.b32.xlu0 %v185, 113
    %v191 = vpop.permute.xlu0 %190
    %194 = vrot.lane.b32.xlu0 %v184, 1
    %v195 = vpop.permute.xlu0 %194
    %196 = vrot.lane.b32.xlu0 %v185, 1
    %v197 = vpop.permute.xlu0 %196
    %v200 = vsel %vm86, %v189, %v195
    %v201 = vsel %vm86, %v191, %v197
    %v202 = vperm.slane %v88, 0
    %v203 = vmul.f32 %v200, %v202
    %v204 = vmul.f32 %v201, %v202
    %205 = vrot.lane.b32.xlu0 %v184, 127
    %v206 = vpop.permute.xlu0 %205
    %207 = vrot.lane.b32.xlu0 %v185, 127
    %v208 = vpop.permute.xlu0 %207
    %211 = vrot.lane.b32.xlu0 %v184, 15
    %v212 = vpop.permute.xlu0 %211
    %213 = vrot.lane.b32.xlu0 %v185, 15
    %v214 = vpop.permute.xlu0 %213
    %v217 = vsel %vm96, %v206, %v212
    %v218 = vsel %vm96, %v208, %v214
    %v219 = vperm.slane %v98, 0
    %v220 = vmul.f32 %v217, %v219
    %v221 = vmul.f32 %v218, %v219
    %v222 = vld [vmem:[#allocation2 + $0x10] sm:$0xf]
    %v223 = vld [vmem:[#allocation2 + $0x18] sm:$0xf]
    %v224 = vld [vmem:[#allocation2 + $0x20] sm:$0xf]
    %v225 = vld [vmem:[#allocation2 + $0x28] sm:$0xf]
    %v226 = vpack.c.bf16 %v204, %v203
    %v227 = vpack.c.bf16 %v185, %v184
    %v228 = vpack.c.bf16 %v221, %v220
    %v229 = vpack.c.bf16 1.0, 1.0
    %v234 = vunpack.c.l.b16 %v222
    %v235 = vunpack.c.l.b16 %v223
    %v236 = vunpack.c.l.b16 %v224
    %v237 = vunpack.c.l.b16 %v225
    %v238 = vpack.c.b16 %v235, %v234
    %v239 = vpack.c.b16 %v237, %v236
    %vm240 = vcmask 400384
    %v242 = vsel %vm240, %v238, 0
    %v245 = vsel %vm240, %v239, 0
    %v247 = vsel 0, 4294967295, 65535
    %v248 = vsel %vm137, %v247, 0
    %v250 = vand.u32 %v229, %v248
    %252 = vmatpush.bf16.msra.mxu0 0
    %253 = vmatpush.bf16.msra.mxu0 0
    %254 = vmatpush.bf16.msra.mxu0 0
    %255 = vmatpush.bf16.msra.mxu0 0
    %256 = vmatpush.bf16.msra.mxu0 %v250
    %257 = vmatpush.bf16.msra.mxu0 %v228
    %258 = vmatpush.bf16.msra.mxu0 %v227
    %259 = vmatpush.bf16.msra.mxu0 %v226
    %260 = vmatmul.bf16.gmra.mxu0 %v242
    %v261 = vpop.f32.mrf.mxu0
    %v262 = vadd.f32 0.0, %v261
    %v263 = vpop.f32.mrf.mxu0
    %v264 = vadd.f32 0.0, %v263
    %265 = vmatmul.bf16.gmra.mxu0 %v245
    %v266 = vpop.f32.mrf.mxu0
    %v267 = vadd.f32 0.0, %v266
    %v268 = vpop.f32.mrf.mxu0
    %v269 = vadd.f32 0.0, %v268
    %270 = vdwg.mxu0
    %vm271 = vcmp.gt.f32.partialorder %v262, 0.0
    %vm272 = vcmp.gt.f32.partialorder %v264, 0.0
    %vm273 = vcmp.gt.f32.partialorder %v267, 0.0
    %vm274 = vcmp.gt.f32.partialorder %v269, 0.0
    %v275 = vmul.f32 %v262, 0.2
    %v276 = vmul.f32 %v264, 0.2
    %v277 = vmul.f32 %v267, 0.2
    %v278 = vmul.f32 %v269, 0.2
    %v279 = vsel %vm271, %v262, %v275
    %v280 = vsel %vm272, %v264, %v276
    %v281 = vsel %vm273, %v267, %v277
    %v282 = vsel %vm274, %v269, %v278
    %v283 = vld [vmem:[#allocation2 + $0x30] sm:$0xf]
    %v284 = vld [vmem:[#allocation2 + $0x38] sm:$0xf]
    %v285 = vld [vmem:[#allocation2 + $0x40] sm:$0xf]
    %v286 = vld [vmem:[#allocation2 + $0x48] sm:$0xf]
    %v291 = vunpack.c.l.b16 %v283
    %v292 = vunpack.c.l.b16 %v284
    %v293 = vunpack.c.l.b16 %v285
    %v294 = vunpack.c.l.b16 %v286
    %v295 = vpack.c.b16 %v292, %v291
    %v296 = vpack.c.b16 %v294, %v293
    %vm297 = vcmask 138240
    %v299 = vsel %vm297, %v295, 0
    %v302 = vsel %vm297, %v296, 0
    %304 = vmatpush.bf16.msra.mxu0 0
    %305 = vmatpush.bf16.msra.mxu0 0
    %306 = vmatpush.bf16.msra.mxu0 0
    %307 = vmatpush.bf16.msra.mxu0 0
    %308 = vmatpush.bf16.msra.mxu0 0
    %309 = vmatpush.bf16.msra.mxu0 0
    %310 = vmatpush.bf16.msra.mxu0 %v250
    %311 = vmatpush.bf16.msra.mxu0 %v227
    %312 = vmatmul.bf16.gmra.mxu0 %v299
    %v313 = vpop.f32.mrf.mxu0
    %v314 = vadd.f32 0.0, %v313
    %v315 = vpop.f32.mrf.mxu0
    %v316 = vadd.f32 0.0, %v315
    %317 = vmatmul.bf16.gmra.mxu0 %v302
    %v318 = vpop.f32.mrf.mxu0
    %v319 = vadd.f32 0.0, %v318
    %v320 = vpop.f32.mrf.mxu0
    %v321 = vadd.f32 0.0, %v320
    %322 = vdwg.mxu0
    %v323 = vadd.f32 %v279, %v314
    %v324 = vadd.f32 %v280, %v316
    %v325 = vadd.f32 %v281, %v319
    %v326 = vadd.f32 %v282, %v321
    %331 = vrot.lane.b32.xlu0 %v323, 113
    %v332 = vpop.permute.xlu0 %331
    %333 = vrot.lane.b32.xlu0 %v324, 113
    %v334 = vpop.permute.xlu0 %333
    %335 = vrot.lane.b32.xlu0 %v325, 113
    %v336 = vpop.permute.xlu0 %335
    %337 = vrot.lane.b32.xlu0 %v326, 113
    %v338 = vpop.permute.xlu0 %337
    %343 = vrot.lane.b32.xlu0 %v323, 1
    %v344 = vpop.permute.xlu0 %343
    %345 = vrot.lane.b32.xlu0 %v324, 1
    %v346 = vpop.permute.xlu0 %345
    %347 = vrot.lane.b32.xlu0 %v325, 1
    %v348 = vpop.permute.xlu0 %347
    %349 = vrot.lane.b32.xlu0 %v326, 1
    %v350 = vpop.permute.xlu0 %349
    %v355 = vsel %vm86, %v332, %v344
    %v356 = vsel %vm86, %v334, %v346
    %v357 = vsel %vm86, %v336, %v348
    %v358 = vsel %vm86, %v338, %v350
    %v359 = vmul.f32 %v355, %v202
    %v360 = vmul.f32 %v356, %v202
    %v361 = vmul.f32 %v357, %v202
    %v362 = vmul.f32 %v358, %v202
    %363 = vrot.lane.b32.xlu0 %v323, 127
    %v364 = vpop.permute.xlu0 %363
    %365 = vrot.lane.b32.xlu0 %v324, 127
    %v366 = vpop.permute.xlu0 %365
    %367 = vrot.lane.b32.xlu0 %v325, 127
    %v368 = vpop.permute.xlu0 %367
    %369 = vrot.lane.b32.xlu0 %v326, 127
    %v370 = vpop.permute.xlu0 %369
    %375 = vrot.lane.b32.xlu0 %v323, 15
    %v376 = vpop.permute.xlu0 %375
    %377 = vrot.lane.b32.xlu0 %v324, 15
    %v378 = vpop.permute.xlu0 %377
    %379 = vrot.lane.b32.xlu0 %v325, 15
    %v380 = vpop.permute.xlu0 %379
    %381 = vrot.lane.b32.xlu0 %v326, 15
    %v382 = vpop.permute.xlu0 %381
    %v387 = vsel %vm96, %v364, %v376
    %v388 = vsel %vm96, %v366, %v378
    %v389 = vsel %vm96, %v368, %v380
    %v390 = vsel %vm96, %v370, %v382
    %v391 = vmul.f32 %v387, %v219
    %v392 = vmul.f32 %v388, %v219
    %v393 = vmul.f32 %v389, %v219
    %v394 = vmul.f32 %v390, %v219
    %v395 = vld [vmem:[#allocation2 + $0x50] sm:$0xf]
    %v396 = vld [vmem:[#allocation2 + $0x58] sm:$0xf]
    %v397 = vld [vmem:[#allocation2 + $0x60] sm:$0xf]
    %v398 = vld [vmem:[#allocation2 + $0x68] sm:$0xf]
    %v399 = vld [vmem:[#allocation2 + $0x70] sm:$0xf]
    %v400 = vld [vmem:[#allocation2 + $0x78] sm:$0xf]
    %v401 = vld [vmem:[#allocation2 + $0x80] sm:$0xf]
    %v402 = vld [vmem:[#allocation2 + $0x88] sm:$0xf]
    %v403 = vpack.c.bf16 %v360, %v359
    %v404 = vpack.c.bf16 %v362, %v361
    %v405 = vpack.c.bf16 %v324, %v323
    %v406 = vpack.c.bf16 %v326, %v325
    %v407 = vpack.c.bf16 %v392, %v391
    %v408 = vpack.c.bf16 %v394, %v393
    %v417 = vunpack.c.l.b16 %v395
    %v418 = vunpack.c.l.b16 %v396
    %v419 = vunpack.c.l.b16 %v397
    %v420 = vunpack.c.l.b16 %v398
    %v421 = vunpack.c.l.b16 %v399
    %v422 = vunpack.c.l.b16 %v400
    %v423 = vunpack.c.l.b16 %v401
    %v424 = vunpack.c.l.b16 %v402
    %v425 = vpack.c.b16 %v418, %v417
    %v426 = vpack.c.b16 %v420, %v419
    %v427 = vpack.c.b16 %v422, %v421
    %v428 = vpack.c.b16 %v424, %v423
    %vm429 = vcmask 793600
    %v431 = vsel %vm429, %v425, 0
    %v434 = vsel %vm429, %v426, 0
    %v437 = vsel %vm429, %v427, 0
    %v440 = vsel %vm429, %v428, 0
    %442 = vmatpush.bf16.msra.mxu0 0
    %443 = vmatpush.bf16.msra.mxu0 %v250
    %444 = vmatpush.bf16.msra.mxu0 %v408
    %445 = vmatpush.bf16.msra.mxu0 %v407
    %446 = vmatpush.bf16.msra.mxu0 %v406
    %447 = vmatpush.bf16.msra.mxu0 %v405
    %448 = vmatpush.bf16.msra.mxu0 %v404
    %449 = vmatpush.bf16.msra.mxu0 %v403
    %450 = vmatmul.bf16.gmra.mxu0 %v431
    %v451 = vpop.f32.mrf.mxu0
    %v452 = vadd.f32 0.0, %v451
    %v453 = vpop.f32.mrf.mxu0
    %v454 = vadd.f32 0.0, %v453
    %455 = vmatmul.bf16.gmra.mxu0 %v434
    %v456 = vpop.f32.mrf.mxu0
    %v457 = vadd.f32 0.0, %v456
    %v458 = vpop.f32.mrf.mxu0
    %v459 = vadd.f32 0.0, %v458
    %460 = vmatmul.bf16.gmra.mxu0 %v437
    %v461 = vpop.f32.mrf.mxu0
    %v462 = vadd.f32 0.0, %v461
    %v463 = vpop.f32.mrf.mxu0
    %v464 = vadd.f32 0.0, %v463
    %465 = vmatmul.bf16.gmra.mxu0 %v440
    %v466 = vpop.f32.mrf.mxu0
    %v467 = vadd.f32 0.0, %v466
    %v468 = vpop.f32.mrf.mxu0
    %v469 = vadd.f32 0.0, %v468
    %470 = vdwg.mxu0
    %vm471 = vcmp.gt.f32.partialorder %v452, 0.0
    %vm472 = vcmp.gt.f32.partialorder %v454, 0.0
    %vm473 = vcmp.gt.f32.partialorder %v457, 0.0
    %vm474 = vcmp.gt.f32.partialorder %v459, 0.0
    %vm475 = vcmp.gt.f32.partialorder %v462, 0.0
    %vm476 = vcmp.gt.f32.partialorder %v464, 0.0
    %vm477 = vcmp.gt.f32.partialorder %v467, 0.0
    %vm478 = vcmp.gt.f32.partialorder %v469, 0.0
    %v479 = vmul.f32 %v452, 0.2
    %v480 = vmul.f32 %v454, 0.2
    %v481 = vmul.f32 %v457, 0.2
    %v482 = vmul.f32 %v459, 0.2
    %v483 = vmul.f32 %v462, 0.2
    %v484 = vmul.f32 %v464, 0.2
    %v485 = vmul.f32 %v467, 0.2
    %v486 = vmul.f32 %v469, 0.2
    %v487 = vsel %vm471, %v452, %v479
    %v488 = vsel %vm472, %v454, %v480
    %v489 = vsel %vm473, %v457, %v481
    %v490 = vsel %vm474, %v459, %v482
    %v491 = vsel %vm475, %v462, %v483
    %v492 = vsel %vm476, %v464, %v484
    %v493 = vsel %vm477, %v467, %v485
    %v494 = vsel %vm478, %v469, %v486
    %503 = vrot.lane.b32.xlu0 %v487, 113
    %v504 = vpop.permute.xlu0 %503
    %505 = vrot.lane.b32.xlu0 %v488, 113
    %v506 = vpop.permute.xlu0 %505
    %507 = vrot.lane.b32.xlu0 %v489, 113
    %v508 = vpop.permute.xlu0 %507
    %509 = vrot.lane.b32.xlu0 %v490, 113
    %v510 = vpop.permute.xlu0 %509
    %511 = vrot.lane.b32.xlu0 %v491, 113
    %v512 = vpop.permute.xlu0 %511
    %513 = vrot.lane.b32.xlu0 %v492, 113
    %v514 = vpop.permute.xlu0 %513
    %515 = vrot.lane.b32.xlu0 %v493, 113
    %v516 = vpop.permute.xlu0 %515
    %517 = vrot.lane.b32.xlu0 %v494, 113
    %v518 = vpop.permute.xlu0 %517
    %527 = vrot.lane.b32.xlu0 %v487, 1
    %v528 = vpop.permute.xlu0 %527
    %529 = vrot.lane.b32.xlu0 %v488, 1
    %v530 = vpop.permute.xlu0 %529
    %531 = vrot.lane.b32.xlu0 %v489, 1
    %v532 = vpop.permute.xlu0 %531
    %533 = vrot.lane.b32.xlu0 %v490, 1
    %v534 = vpop.permute.xlu0 %533
    %535 = vrot.lane.b32.xlu0 %v491, 1
    %v536 = vpop.permute.xlu0 %535
    %537 = vrot.lane.b32.xlu0 %v492, 1
    %v538 = vpop.permute.xlu0 %537
    %539 = vrot.lane.b32.xlu0 %v493, 1
    %v540 = vpop.permute.xlu0 %539
    %541 = vrot.lane.b32.xlu0 %v494, 1
    %v542 = vpop.permute.xlu0 %541
    %v551 = vsel %vm86, %v504, %v528
    %v552 = vsel %vm86, %v506, %v530
    %v553 = vsel %vm86, %v508, %v532
    %v554 = vsel %vm86, %v510, %v534
    %v555 = vsel %vm86, %v512, %v536
    %v556 = vsel %vm86, %v514, %v538
    %v557 = vsel %vm86, %v516, %v540
    %v558 = vsel %vm86, %v518, %v542
    %v559 = vmul.f32 %v551, %v202
    %v560 = vmul.f32 %v552, %v202
    %v561 = vmul.f32 %v553, %v202
    %v562 = vmul.f32 %v554, %v202
    %v563 = vmul.f32 %v555, %v202
    %v564 = vmul.f32 %v556, %v202
    %v565 = vmul.f32 %v557, %v202
    %v566 = vmul.f32 %v558, %v202
    %567 = vrot.lane.b32.xlu0 %v487, 127
    %v568 = vpop.permute.xlu0 %567
    %569 = vrot.lane.b32.xlu0 %v488, 127
    %v570 = vpop.permute.xlu0 %569
    %571 = vrot.lane.b32.xlu0 %v489, 127
    %v572 = vpop.permute.xlu0 %571
    %573 = vrot.lane.b32.xlu0 %v490, 127
    %v574 = vpop.permute.xlu0 %573
    %575 = vrot.lane.b32.xlu0 %v491, 127
    %v576 = vpop.permute.xlu0 %575
    %577 = vrot.lane.b32.xlu0 %v492, 127
    %v578 = vpop.permute.xlu0 %577
    %579 = vrot.lane.b32.xlu0 %v493, 127
    %v580 = vpop.permute.xlu0 %579
    %581 = vrot.lane.b32.xlu0 %v494, 127
    %v582 = vpop.permute.xlu0 %581
    %591 = vrot.lane.b32.xlu0 %v487, 15
    %v592 = vpop.permute.xlu0 %591
    %593 = vrot.lane.b32.xlu0 %v488, 15
    %v594 = vpop.permute.xlu0 %593
    %595 = vrot.lane.b32.xlu0 %v489, 15
    %v596 = vpop.permute.xlu0 %595
    %597 = vrot.lane.b32.xlu0 %v490, 15
    %v598 = vpop.permute.xlu0 %597
    %599 = vrot.lane.b32.xlu0 %v491, 15
    %v600 = vpop.permute.xlu0 %599
    %601 = vrot.lane.b32.xlu0 %v492, 15
    %v602 = vpop.permute.xlu0 %601
    %603 = vrot.lane.b32.xlu0 %v493, 15
    %v604 = vpop.permute.xlu0 %603
    %605 = vrot.lane.b32.xlu0 %v494, 15
    %v606 = vpop.permute.xlu0 %605
    %v615 = vsel %vm96, %v568, %v592
    %v616 = vsel %vm96, %v570, %v594
    %v617 = vsel %vm96, %v572, %v596
    %v618 = vsel %vm96, %v574, %v598
    %v619 = vsel %vm96, %v576, %v600
    %v620 = vsel %vm96, %v578, %v602
    %v621 = vsel %vm96, %v580, %v604
    %v622 = vsel %vm96, %v582, %v606
    %v623 = vmul.f32 %v615, %v219
    %v624 = vmul.f32 %v616, %v219
    %v625 = vmul.f32 %v617, %v219
    %v626 = vmul.f32 %v618, %v219
    %v627 = vmul.f32 %v619, %v219
    %v628 = vmul.f32 %v620, %v219
    %v629 = vmul.f32 %v621, %v219
    %v630 = vmul.f32 %v622, %v219
    %v631 = vld [vmem:[#allocation2 + $0x90] sm:$0xff]
    %v632 = vld [vmem:[#allocation2 + $0x98] sm:$0xff]
    %v633 = vld [vmem:[#allocation2 + $0xa0] sm:$0xff]
    %v634 = vld [vmem:[#allocation2 + $0xa8] sm:$0xff]
    %v635 = vpack.c.bf16 %v560, %v559
    %v636 = vpack.c.bf16 %v562, %v561
    %v637 = vpack.c.bf16 %v564, %v563
    %v638 = vpack.c.bf16 %v566, %v565
    %v639 = vpack.c.bf16 %v488, %v487
    %v640 = vpack.c.bf16 %v490, %v489
    %v641 = vpack.c.bf16 %v492, %v491
    %v642 = vpack.c.bf16 %v494, %v493
    %v643 = vpack.c.bf16 %v624, %v623
    %v644 = vpack.c.bf16 %v626, %v625
    %v645 = vpack.c.bf16 %v628, %v627
    %v646 = vpack.c.bf16 %v630, %v629
    %v651 = vunpack.c.l.b16 %v631
    %v652 = vunpack.c.h.b16 %v631
    %v653 = vunpack.c.l.b16 %v632
    %v654 = vunpack.c.h.b16 %v632
    %v655 = vunpack.c.l.b16 %v633
    %v656 = vunpack.c.h.b16 %v633
    %v657 = vunpack.c.l.b16 %v634
    %v658 = vunpack.c.h.b16 %v634
    %v659 = vpack.c.b16 %v653, %v651
    %v660 = vpack.c.b16 %v654, %v652
    %v661 = vpack.c.b16 %v657, %v655
    %v662 = vpack.c.b16 %v658, %v656
    %vm665 = vcmask 531456
    %v667 = vsel %vm665, %v660, 0
    %v670 = vsel %vm665, %v662, 0
    %672 = vmatpush.bf16.msra.mxu0 %v642
    %673 = vmatpush.bf16.msra.mxu0 %v641
    %674 = vmatpush.bf16.msra.mxu0 %v640
    %675 = vmatpush.bf16.msra.mxu0 %v639
    %676 = vmatpush.bf16.msra.mxu0 %v638
    %677 = vmatpush.bf16.msra.mxu0 %v637
    %678 = vmatpush.bf16.msra.mxu0 %v636
    %679 = vmatpush.bf16.msra.mxu0 %v635
    %680 = vmatmul.bf16.gmra.mxu0 %v659
    %v681 = vpop.f32.mrf.mxu0
    %v682 = vadd.f32 0.0, %v681
    %v683 = vpop.f32.mrf.mxu0
    %v684 = vadd.f32 0.0, %v683
    %685 = vmatmul.bf16.gmra.mxu0 %v661
    %v686 = vpop.f32.mrf.mxu0
    %v687 = vadd.f32 0.0, %v686
    %v688 = vpop.f32.mrf.mxu0
    %v689 = vadd.f32 0.0, %v688
    %690 = vdwg.mxu0
    %691 = vmatpush.bf16.msra.mxu0 0
    %692 = vmatpush.bf16.msra.mxu0 0
    %693 = vmatpush.bf16.msra.mxu0 0
    %694 = vmatpush.bf16.msra.mxu0 %v250
    %695 = vmatpush.bf16.msra.mxu0 %v646
    %696 = vmatpush.bf16.msra.mxu0 %v645
    %697 = vmatpush.bf16.msra.mxu0 %v644
    %698 = vmatpush.bf16.msra.mxu0 %v643
    %699 = vmatmul.bf16.gmra.mxu0 %v667
    %v700 = vpop.f32.mrf.mxu0
    %v701 = vadd.f32 %v682, %v700
    %v702 = vpop.f32.mrf.mxu0
    %v703 = vadd.f32 %v684, %v702
    %704 = vmatmul.bf16.gmra.mxu0 %v670
    %v705 = vpop.f32.mrf.mxu0
    %v706 = vadd.f32 %v687, %v705
    %v707 = vpop.f32.mrf.mxu0
    %v708 = vadd.f32 %v689, %v707
    %709 = vdwg.mxu0
    %vm710 = vcmp.gt.f32.partialorder %v701, 0.0
    %vm711 = vcmp.gt.f32.partialorder %v703, 0.0
    %vm712 = vcmp.gt.f32.partialorder %v706, 0.0
    %vm713 = vcmp.gt.f32.partialorder %v708, 0.0
    %v714 = vmul.f32 %v701, 0.2
    %v715 = vmul.f32 %v703, 0.2
    %v716 = vmul.f32 %v706, 0.2
    %v717 = vmul.f32 %v708, 0.2
    %v718 = vsel %vm710, %v701, %v714
    %v719 = vsel %vm711, %v703, %v715
    %v720 = vsel %vm712, %v706, %v716
    %v721 = vsel %vm713, %v708, %v717
    %v722 = vld [vmem:[#allocation2 + $0xb0] sm:$0xf]
    %v723 = vld [vmem:[#allocation2 + $0xb8] sm:$0xf]
    %v724 = vld [vmem:[#allocation2 + $0xc0] sm:$0xf]
    %v725 = vld [vmem:[#allocation2 + $0xc8] sm:$0xf]
    %v730 = vunpack.c.l.b16 %v722
    %v731 = vunpack.c.l.b16 %v723
    %v732 = vunpack.c.l.b16 %v724
    %v733 = vunpack.c.l.b16 %v725
    %v734 = vpack.c.b16 %v731, %v730
    %v735 = vpack.c.b16 %v733, %v732
    %v737 = vsel %vm665, %v734, 0
    %v740 = vsel %vm665, %v735, 0
    %742 = vmatpush.bf16.msra.mxu0 0
    %743 = vmatpush.bf16.msra.mxu0 0
    %744 = vmatpush.bf16.msra.mxu0 0
    %745 = vmatpush.bf16.msra.mxu0 %v250
    %746 = vmatpush.bf16.msra.mxu0 %v642
    %747 = vmatpush.bf16.msra.mxu0 %v641
    %748 = vmatpush.bf16.msra.mxu0 %v640
    %749 = vmatpush.bf16.msra.mxu0 %v639
    %750 = vmatmul.bf16.gmra.mxu0 %v737
    %v751 = vpop.f32.mrf.mxu0
    %v752 = vadd.f32 0.0, %v751
    %v753 = vpop.f32.mrf.mxu0
    %v754 = vadd.f32 0.0, %v753
    %755 = vmatmul.bf16.gmra.mxu0 %v740
    %v756 = vpop.f32.mrf.mxu0
    %v757 = vadd.f32 0.0, %v756
    %v758 = vpop.f32.mrf.mxu0
    %v759 = vadd.f32 0.0, %v758
    %760 = vdwg.mxu0
    %v761 = vadd.f32 %v718, %v752
    %v762 = vadd.f32 %v719, %v754
    %v763 = vadd.f32 %v720, %v757
    %v764 = vadd.f32 %v721, %v759
    %769 = vrot.lane.b32.xlu0 %v761, 113
    %v770 = vpop.permute.xlu0 %769
    %771 = vrot.lane.b32.xlu0 %v762, 113
    %v772 = vpop.permute.xlu0 %771
    %773 = vrot.lane.b32.xlu0 %v763, 113
    %v774 = vpop.permute.xlu0 %773
    %775 = vrot.lane.b32.xlu0 %v764, 113
    %v776 = vpop.permute.xlu0 %775
    %781 = vrot.lane.b32.xlu0 %v761, 1
    %v782 = vpop.permute.xlu0 %781
    %783 = vrot.lane.b32.xlu0 %v762, 1
    %v784 = vpop.permute.xlu0 %783
    %785 = vrot.lane.b32.xlu0 %v763, 1
    %v786 = vpop.permute.xlu0 %785
    %787 = vrot.lane.b32.xlu0 %v764, 1
    %v788 = vpop.permute.xlu0 %787
    %v793 = vsel %vm86, %v770, %v782
    %v794 = vsel %vm86, %v772, %v784
    %v795 = vsel %vm86, %v774, %v786
    %v796 = vsel %vm86, %v776, %v788
    %v797 = vmul.f32 %v793, %v202
    %v798 = vmul.f32 %v794, %v202
    %v799 = vmul.f32 %v795, %v202
    %v800 = vmul.f32 %v796, %v202
    %801 = vrot.lane.b32.xlu0 %v761, 127
    %v802 = vpop.permute.xlu0 %801
    %803 = vrot.lane.b32.xlu0 %v762, 127
    %v804 = vpop.permute.xlu0 %803
    %805 = vrot.lane.b32.xlu0 %v763, 127
    %v806 = vpop.permute.xlu0 %805
    %807 = vrot.lane.b32.xlu0 %v764, 127
    %v808 = vpop.permute.xlu0 %807
    %813 = vrot.lane.b32.xlu0 %v761, 15
    %v814 = vpop.permute.xlu0 %813
    %815 = vrot.lane.b32.xlu0 %v762, 15
    %v816 = vpop.permute.xlu0 %815
    %817 = vrot.lane.b32.xlu0 %v763, 15
    %v818 = vpop.permute.xlu0 %817
    %819 = vrot.lane.b32.xlu0 %v764, 15
    %v820 = vpop.permute.xlu0 %819
    %v825 = vsel %vm96, %v802, %v814
    %v826 = vsel %vm96, %v804, %v816
    %v827 = vsel %vm96, %v806, %v818
    %v828 = vsel %vm96, %v808, %v820
    %v829 = vmul.f32 %v825, %v219
    %v830 = vmul.f32 %v826, %v219
    %v831 = vmul.f32 %v827, %v219
    %v832 = vmul.f32 %v828, %v219
    %v833 = vld [vmem:[#allocation2 + $0xd0] sm:$0xf]
    %v834 = vld [vmem:[#allocation2 + $0xd8] sm:$0xf]
    %v835 = vpack.c.bf16 %v798, %v797
    %v836 = vpack.c.bf16 %v800, %v799
    %v837 = vpack.c.bf16 %v762, %v761
    %v838 = vpack.c.bf16 %v764, %v763
    %v839 = vpack.c.bf16 %v830, %v829
    %v840 = vpack.c.bf16 %v832, %v831
    %v843 = vunpack.c.l.b16 %v833
    %v844 = vunpack.c.l.b16 %v834
    %v845 = vpack.c.b16 %v844, %v843
    %v847 = vsel %vm429, %v845, 0
    %849 = vmatpush.bf16.msra.mxu0 0
    %850 = vmatpush.bf16.msra.mxu0 %v250
    %851 = vmatpush.bf16.msra.mxu0 %v840
    %852 = vmatpush.bf16.msra.mxu0 %v839
    %853 = vmatpush.bf16.msra.mxu0 %v838
    %854 = vmatpush.bf16.msra.mxu0 %v837
    %855 = vmatpush.bf16.msra.mxu0 %v836
    %856 = vmatpush.bf16.msra.mxu0 %v835
    %857 = vmatmul.bf16.gmra.mxu0 %v847
    %v858 = vpop.f32.mrf.mxu0
    %v859 = vadd.f32 0.0, %v858
    %v860 = vpop.f32.mrf.mxu0
    %v861 = vadd.f32 0.0, %v860
    %862 = vdwg.mxu0
    %vm863 = vcmp.gt.f32.partialorder %v859, 0.0
    %vm864 = vcmp.gt.f32.partialorder %v861, 0.0
    %v865 = vmul.f32 %v859, 0.2
    %v866 = vmul.f32 %v861, 0.2
    %v867 = vsel %vm863, %v859, %v865
    %v868 = vsel %vm864, %v861, %v866
    %871 = vrot.lane.b32.xlu0 %v867, 113
    %v872 = vpop.permute.xlu0 %871
    %873 = vrot.lane.b32.xlu0 %v868, 113
    %v874 = vpop.permute.xlu0 %873
    %877 = vrot.lane.b32.xlu0 %v867, 1
    %v878 = vpop.permute.xlu0 %877
    %879 = vrot.lane.b32.xlu0 %v868, 1
    %v880 = vpop.permute.xlu0 %879
    %v883 = vsel %vm86, %v872, %v878
    %v884 = vsel %vm86, %v874, %v880
    %v885 = vmul.f32 %v883, %v202
    %v886 = vmul.f32 %v884, %v202
    %887 = vrot.lane.b32.xlu0 %v867, 127
    %v888 = vpop.permute.xlu0 %887
    %889 = vrot.lane.b32.xlu0 %v868, 127
    %v890 = vpop.permute.xlu0 %889
    %893 = vrot.lane.b32.xlu0 %v867, 15
    %v894 = vpop.permute.xlu0 %893
    %895 = vrot.lane.b32.xlu0 %v868, 15
    %v896 = vpop.permute.xlu0 %895
    %v899 = vsel %vm96, %v888, %v894
    %v900 = vsel %vm96, %v890, %v896
    %v901 = vmul.f32 %v899, %v219
    %v902 = vmul.f32 %v900, %v219
    %v903 = vld [vmem:[#allocation2 + $0xe0] sm:$0xf]
    %v904 = vpack.c.bf16 %v886, %v885
    %v905 = vpack.c.bf16 %v868, %v867
    %v906 = vpack.c.bf16 %v902, %v901
    %v908 = vsel %vm240, %v903, 0
    %910 = vmatpush.bf16.msra.mxu0 0
    %911 = vmatpush.bf16.msra.mxu0 0
    %912 = vmatpush.bf16.msra.mxu0 0
    %913 = vmatpush.bf16.msra.mxu0 0
    %914 = vmatpush.bf16.msra.mxu0 %v250
    %915 = vmatpush.bf16.msra.mxu0 %v906
    %916 = vmatpush.bf16.msra.mxu0 %v905
    %917 = vmatpush.bf16.msra.mxu0 %v904
    %918 = vmatmul.bf16.gmra.mxu0 %v908
    %v919 = vpop.f32.mrf.mxu0
    %v920 = vadd.f32 0.0, %v919
    %v921 = vpop.f32.mrf.mxu0
    %922 = vdwg.mxu0
    %vm923 = vcmp.gt.f32.partialorder %v920, 0.0
    %v924 = vmul.f32 %v920, 0.2
    %v925 = vsel %vm923, %v920, %v924
    %v926 = vld [vmem:[#allocation2 + $0xe8] sm:$0x1]
    %v927 = vpack.c.bf16 1.0, %v925
    %vm928 = vcmask 72704
    %v930 = vsel %vm928, %v926, 0
    %v932 = vsel %vm143, 4294967295, 65535
    %v933 = vsel %vm145, %v932, 0
    %v935 = vand.u32 %v927, %v933
    %937 = vmatpush.bf16.msra.mxu0 0
    %938 = vmatpush.bf16.msra.mxu0 0
    %939 = vmatpush.bf16.msra.mxu0 0
    %940 = vmatpush.bf16.msra.mxu0 0
    %941 = vmatpush.bf16.msra.mxu0 0
    %942 = vmatpush.bf16.msra.mxu0 0
    %943 = vmatpush.bf16.msra.mxu0 0
    %944 = vmatpush.bf16.msra.mxu0 %v935
    %945 = vmatmul.bf16.gmra.mxu0 %v930
    %v946 = vpop.f32.mrf.mxu0
    %v947 = vadd.f32 0.0, %v946
    %v948 = vpop.f32.mrf.mxu0
    %949 = vdwg.mxu0
    %v950 = vld [vmem:[#allocation2 + $0xf0] sm:$0x1]
    %v952 = vsel %vm928, %v950, 0
    %954 = vmatpush.bf16.msra.mxu0 0
    %955 = vmatpush.bf16.msra.mxu0 0
    %956 = vmatpush.bf16.msra.mxu0 0
    %957 = vmatpush.bf16.msra.mxu0 0
    %958 = vmatpush.bf16.msra.mxu0 0
    %959 = vmatpush.bf16.msra.mxu0 0
    %960 = vmatpush.bf16.msra.mxu0 0
    %961 = vmatpush.bf16.msra.mxu0 %v935
    %962 = vmatmul.bf16.gmra.mxu0 %v952
    %v963 = vpop.f32.mrf.mxu0
    %v964 = vadd.f32 0.0, %v963
    %v965 = vpop.f32.mrf.mxu0
    %966 = vdwg.mxu0
    %v967 = vld [vmem:[#allocation2 + $0xf8] sm:$0xf]
    %v969 = vsel %vm928, %v967, 0
    %971 = vmatpush.bf16.msra.mxu0 0
    %972 = vmatpush.bf16.msra.mxu0 0
    %973 = vmatpush.bf16.msra.mxu0 0
    %974 = vmatpush.bf16.msra.mxu0 0
    %975 = vmatpush.bf16.msra.mxu0 0
    %976 = vmatpush.bf16.msra.mxu0 0
    %977 = vmatpush.bf16.msra.mxu0 0
    %978 = vmatpush.bf16.msra.mxu0 %v935
    %979 = vmatmul.bf16.gmra.mxu0 %v969
    %v980 = vpop.f32.mrf.mxu0
    %v981 = vadd.f32 0.0, %v980
    %v982 = vpop.f32.mrf.mxu0
    %983 = vdwg.mxu0
    %v984 = vperm.slane %v964, 0
    %986 = vrot.lane.b32.xlu0 %v984, 120
    %v987 = vpop.permute.xlu0 %986
    %989 = vxpose.xlu0.b32.start [1/16] %v947, 128
    %990 = vxpose.xlu0.b32.cont [2/16] 0.0, 128
    %991 = vxpose.xlu0.b32.cont [3/16] 0.0, 128
    %992 = vxpose.xlu0.b32.cont [4/16] 0.0, 128
    %993 = vxpose.xlu0.b32.cont [5/16] 0.0, 128
    %994 = vxpose.xlu0.b32.cont [6/16] 0.0, 128
    %995 = vxpose.xlu0.b32.cont [7/16] 0.0, 128
    %996 = vxpose.xlu0.b32.cont [8/16] 0.0, 128
    %997 = vxpose.xlu0.b32.cont [9/16] 0.0, 128
    %998 = vxpose.xlu0.b32.cont [10/16] 0.0, 128
    %999 = vxpose.xlu0.b32.cont [11/16] 0.0, 128
    %1000 = vxpose.xlu0.b32.cont [12/16] 0.0, 128
    %1001 = vxpose.xlu0.b32.cont [13/16] 0.0, 128
    %1002 = vxpose.xlu0.b32.cont [14/16] 0.0, 128
    %1003 = vxpose.xlu0.b32.cont [15/16] 0.0, 128
    %1004 = vxpose.xlu0.b32.end [16/16] 0.0, 128
    %v1005 = vpop.trf.xlu0
    %v1006 = vpop.trf.xlu0
    %v1007 = vpop.trf.xlu0
    %v1008 = vpop.trf.xlu0
    %v1009 = vpop.trf.xlu0
    %v1010 = vpop.trf.xlu0
    %v1011 = vpop.trf.xlu0
    %v1012 = vpop.trf.xlu0
    %v1013 = vpop.trf.xlu0
    %v1014 = vpop.trf.xlu0
    %v1015 = vpop.trf.xlu0
    %v1016 = vpop.trf.xlu0
    %v1017 = vpop.trf.xlu0
    %v1018 = vpop.trf.xlu0
    %v1019 = vpop.trf.xlu0
    %v1020 = vpop.trf.xlu0
    %1022 = vset.pattern.permute.xlu0 0
    %1023 = vperm.xlu0 %1022, %v1005
    %v1024 = vpop.permute.xlu0 %1023
    %1027 = vset.pattern.permute.xlu0 0
    %1028 = vperm.xlu0 %1027, %v1006
    %v1029 = vpop.permute.xlu0 %1028
    %v1031 = vmul.f32 %v1024, %v984
    %v1032 = vmul.f32 %v1029, %v987
    %v1033 = vsel %vm159, %v1031, -inf
    %1034 = vmax.xlane.f32.xlu0 %v1033
    %v1035 = vpop.xlane.xlu0 %1034
    %v1036 = vsel %vm159, %v1032, -inf
    %1037 = vmax.xlane.f32.xlu0 %v1036
    %v1038 = vpop.xlane.xlu0 %1037
    %v1039 = vsub.f32 %v1031, %v1035
    %v1040 = vsub.f32 %v1032, %v1038
    %v1041 = vmul.f32 %v1039, 1.442695
    %v1042 = vpow.pop %v1041
    %v1043 = vmul.f32 %v1040, 1.442695
    %v1044 = vpow.pop %v1043
    %v1045 = vsel %vm159, %v1042, 0.0
    %1046 = vadd.xlane.f32.xlu0 %v1045
    %v1047 = vpop.xlane.xlu0 %1046
    %v1048 = vsel %vm159, %v1044, 0.0
    %1049 = vadd.xlane.f32.xlu0 %v1048
    %v1050 = vpop.xlane.xlu0 %1049
    %v1051 = vrcp.pop %v1047
    %v1052 = vmul.f32 %v1047, %v1051
    %v1053 = vsub.f32 1.0, %v1052
    %v1054 = vmul.f32 %v1051, %v1053
    %v1055 = vadd.f32 %v1051, %v1054
    %vm1056 = vweird.f32 %v1047
    %vm1057 = vweird.f32 %v1051
    %vm1058 = vmor %vm1056, %vm1057
    %v1059 = vsel %vm1058, %v1051, %v1055
    %v1060 = vand.u32 2147483647, %v1047
    %vm1061 = vcmp.eq.f32.partialorder %v1060, 8.507059e+37
    %v1062 = vand.u32 %v1047, 2147483648
    %v1063 = vor.u32 1.1754944e-38, %v1062
    %v1064 = vsel %vm1061, %v1063, %v1059
    %v1065 = vmul.f32 %v1042, %v1064
    %v1066 = vrcp.pop %v1050
    %v1067 = vmul.f32 %v1050, %v1066
    %v1068 = vsub.f32 1.0, %v1067
    %v1069 = vmul.f32 %v1066, %v1068
    %v1070 = vadd.f32 %v1066, %v1069
    %vm1071 = vweird.f32 %v1050
    %vm1072 = vweird.f32 %v1066
    %vm1073 = vmor %vm1071, %vm1072
    %v1074 = vsel %vm1073, %v1066, %v1070
    %v1075 = vand.u32 2147483647, %v1050
    %vm1076 = vcmp.eq.f32.partialorder %v1075, 8.507059e+37
    %v1077 = vand.u32 %v1050, 2147483648
    %v1078 = vor.u32 1.1754944e-38, %v1077
    %v1079 = vsel %vm1076, %v1078, %v1074
    %v1080 = vmul.f32 %v1044, %v1079
    %1081 = vxpose.xlu0.b32.start [1/16] %v1065, 128
    %1082 = vxpose.xlu0.b32.cont [2/16] %v1080, 128
    %1083 = vxpose.xlu0.b32.cont [3/16] 0.0, 128
    %1084 = vxpose.xlu0.b32.cont [4/16] 0.0, 128
    %1085 = vxpose.xlu0.b32.cont [5/16] 0.0, 128
    %1086 = vxpose.xlu0.b32.cont [6/16] 0.0, 128
    %1087 = vxpose.xlu0.b32.cont [7/16] 0.0, 128
    %1088 = vxpose.xlu0.b32.cont [8/16] 0.0, 128
    %1089 = vxpose.xlu0.b32.cont [9/16] 0.0, 128
    %1090 = vxpose.xlu0.b32.cont [10/16] 0.0, 128
    %1091 = vxpose.xlu0.b32.cont [11/16] 0.0, 128
    %1092 = vxpose.xlu0.b32.cont [12/16] 0.0, 128
    %1093 = vxpose.xlu0.b32.cont [13/16] 0.0, 128
    %1094 = vxpose.xlu0.b32.cont [14/16] 0.0, 128
    %1095 = vxpose.xlu0.b32.cont [15/16] 0.0, 128
    %1096 = vxpose.xlu0.b32.end [16/16] 0.0, 128
    %v1097 = vpop.trf.xlu0
    %v1098 = vpop.trf.xlu0
    %v1099 = vpop.trf.xlu0
    %v1100 = vpop.trf.xlu0
    %v1101 = vpop.trf.xlu0
    %v1102 = vpop.trf.xlu0
    %v1103 = vpop.trf.xlu0
    %v1104 = vpop.trf.xlu0
    %v1105 = vpop.trf.xlu0
    %v1106 = vpop.trf.xlu0
    %v1107 = vpop.trf.xlu0
    %v1108 = vpop.trf.xlu0
    %v1109 = vpop.trf.xlu0
    %v1110 = vpop.trf.xlu0
    %v1111 = vpop.trf.xlu0
    %v1112 = vpop.trf.xlu0
    %v1113 = vld [vmem:[#allocation7] sm:$0xff]
    %v1114 = vld [vmem:[#allocation7 + $0x8] sm:$0xff]
    %v1115 = vmul.f32 %v1097, %v1113
    %v1116 = vmul.f32 %v1097, %v1114
    %vm1117 = vcmask 130048
    %v1119 = vsel %vm1117, %v981, 0
    %1121 = vmatpush.msra.mxu0 0.0
    %1122 = vmatpush.msra.mxu0 0.0
    %1123 = vmatpush.msra.mxu0 0.0
    %1124 = vmatpush.msra.mxu0 0.0
    %1125 = vmatpush.msra.mxu0 0.0
    %1126 = vmatpush.msra.mxu0 0.0
    %1127 = vmatpush.msra.mxu0 0.0
    %1128 = vmatpush.msra.mxu0 0.0
    %1129 = vmatpush.msra.mxu0 0.0
    %1130 = vmatpush.msra.mxu0 0.0
    %1131 = vmatpush.msra.mxu0 0.0
    %1132 = vmatpush.msra.mxu0 0.0
    %1133 = vmatpush.msra.mxu0 0.0
    %1134 = vmatpush.msra.mxu0 0.0
    %1135 = vmatpush.msra.mxu0 %v1116
    %1136 = vmatpush.msra.mxu0 %v1115
    %1137 = vmatmul.f32.gmra.mxu0 %v1119
    %v1138 = vpop.f32.mrf.mxu0
    %v1139 = vadd.f32 0.0, %v1138
    %1140 = vdwg.mxu0
    %v1141 = vld [vmem:[%s4 + $0x1] sm:$0x1]
    %v1143 = vperm.slane %v1141, 0
    %1144 = vset.pattern.permute.xlu0 1
    %1145 = vperm.xlu0 %1144, %v1143
    %v1146 = vpop.permute.xlu0 %1145
    %v1148 = vmul.f32 %v1146, %v1139
    %v1149 = vadd.f32 %v1148, %v925
    %1151 = vrot.lane.b32.xlu0 %v1149, 113
    %v1152 = vpop.permute.xlu0 %1151
    %1154 = vrot.lane.b32.xlu0 %v1149, 1
    %v1155 = vpop.permute.xlu0 %1154
    %v1157 = vsel %vm86, %v1152, %v1155
    %v1158 = vmul.f32 %v1157, %v202
    %1159 = vrot.lane.b32.xlu0 %v1149, 127
    %v1160 = vpop.permute.xlu0 %1159
    %1162 = vrot.lane.b32.xlu0 %v1149, 15
    %v1163 = vpop.permute.xlu0 %1162
    %v1165 = vsel %vm96, %v1160, %v1163
    %v1166 = vmul.f32 %v1165, %v219
    %v1167 = vld [vmem:[#allocation2 + $0x100] sm:$0x1]
    %v1168 = vpack.c.bf16 %v1149, %v1158
    %v1169 = vpack.c.bf16 1.0, %v1166
    %vm1170 = vcmask 203776
    %v1172 = vsel %vm1170, %v1167, 0
    %v1175 = vand.u32 %v1169, %v933
    %1177 = vmatpush.bf16.msra.mxu0 0
    %1178 = vmatpush.bf16.msra.mxu0 0
    %1179 = vmatpush.bf16.msra.mxu0 0
    %1180 = vmatpush.bf16.msra.mxu0 0
    %1181 = vmatpush.bf16.msra.mxu0 0
    %1182 = vmatpush.bf16.msra.mxu0 0
    %1183 = vmatpush.bf16.msra.mxu0 %v1175
    %1184 = vmatpush.bf16.msra.mxu0 %v1168
    %1185 = vmatmul.bf16.gmra.mxu0 %v1172
    %v1186 = vpop.f32.mrf.mxu0
    %v1187 = vadd.f32 0.0, %v1186
    %v1188 = vpop.f32.mrf.mxu0
    %1189 = vdwg.mxu0
    %v1190 = vld [vmem:[%s6] sm:$0x3]
    %v1191 = vperm.slane %v1187, 0
    %v1192 = vmul.f32 %v1190, %v1191
    %vm1193 = vcmask 123904
    %v1194 = vsel %vm1193, %v1192, 0.0
    %1195 = vadd.xlane.f32.xlu0 %v1194
    %v1196 = vpop.xlane.xlu0 %1195
    %v1197 = vld [vmem:[%s1] sm:$0x3]
    %1199 = vrot.lane.b32.xlu0 %v1197, 1
    %v1200 = vpop.permute.xlu0 %1199
    %v1202 = vsel %vm86, %v1196, %v1200
    %vm1203 = vcmask 56320
    %v1204 = vsel %vm1203, %v1202, 1.0
    %v1205 = vpack.c.bf16 %v1204, %v1204
    %v1206 = vld [vmem:[#allocation5] sm:$0xf]
    %v1208 = vsel %vm159, %v1205, 0
    %v1211 = vsel %vm143, %v1206, 0
    %1213 = vmatpush.bf16.msra.mxu0 0
    %1214 = vmatpush.bf16.msra.mxu0 0
    %1215 = vmatpush.bf16.msra.mxu0 0
    %1216 = vmatpush.bf16.msra.mxu0 0
    %1217 = vmatpush.bf16.msra.mxu0 0
    %1218 = vmatpush.bf16.msra.mxu0 0
    %1219 = vmatpush.bf16.msra.mxu0 0
    %1220 = vmatpush.bf16.msra.mxu0 %v1211
    %1221 = vmatmul.bf16.gmra.mxu0 %v1208
    %v1222 = vpop.f32.mrf.mxu0
    %v1223 = vadd.f32 0.0, %v1222
    %v1224 = vpop.f32.mrf.mxu0
    %1225 = vdwg.mxu0
    %vm1226 = vcmp.gt.f32.partialorder %v1223, 0.0
    %v1227 = vmul.f32 %v1223, 0.2
    %v1228 = vsel %vm1226, %v1223, %v1227
    %v1229 = vpack.c.bf16 %v1228, %v1228
    %v1230 = vld [vmem:[#allocation5 + $0x4] sm:$0xf]
    %v1231 = vld [vmem:[#allocation5 + $0x8] sm:$0xf]
    %v1232 = vld [vmem:[#allocation5 + $0xc] sm:$0xf]
    %v1233 = vld [vmem:[#allocation5 + $0x10] sm:$0xf]
    %v1234 = vld [vmem:[#allocation5 + $0x14] sm:$0xf]
    %v1235 = vld [vmem:[#allocation5 + $0x18] sm:$0xf]
    %v1236 = vld [vmem:[#allocation5 + $0x1c] sm:$0xf]
    %v1237 = vld [vmem:[#allocation5 + $0x20] sm:$0xf]
    %v1238 = vld [vmem:[#allocation5 + $0x24] sm:$0xf]
    %v1239 = vld [vmem:[#allocation5 + $0x28] sm:$0xf]
    %v1240 = vld [vmem:[#allocation5 + $0x2c] sm:$0xf]
    %v1241 = vld [vmem:[#allocation5 + $0x30] sm:$0xf]
    %v1242 = vld [vmem:[#allocation5 + $0x34] sm:$0xf]
    %v1243 = vld [vmem:[#allocation5 + $0x38] sm:$0xf]
    %v1244 = vld [vmem:[#allocation5 + $0x3c] sm:$0xf]
    %v1245 = vld [vmem:[#allocation5 + $0x40] sm:$0xf]
    %v1246 = vld [vmem:[%s4] sm:$0x1]
    %v1248 = vperm.slane %v1246, 0
    %v1266 = vunpack.c.l.b16 %v1230
    %v1267 = vunpack.c.l.b16 %v1231
    %v1268 = vunpack.c.l.b16 %v1232
    %v1269 = vunpack.c.l.b16 %v1233
    %v1270 = vunpack.c.l.b16 %v1234
    %v1271 = vunpack.c.l.b16 %v1235
    %v1272 = vunpack.c.l.b16 %v1236
    %v1273 = vunpack.c.l.b16 %v1237
    %v1274 = vunpack.c.l.b16 %v1238
    %v1275 = vunpack.c.l.b16 %v1239
    %v1276 = vunpack.c.l.b16 %v1240
    %v1277 = vunpack.c.l.b16 %v1241
    %v1278 = vunpack.c.l.b16 %v1242
    %v1279 = vunpack.c.l.b16 %v1243
    %v1280 = vunpack.c.l.b16 %v1244
    %v1281 = vunpack.c.l.b16 %v1245
    %v1282 = vpack.c.b16 %v1267, %v1266
    %v1283 = vpack.c.b16 %v1269, %v1268
    %v1284 = vpack.c.b16 %v1271, %v1270
    %v1285 = vpack.c.b16 %v1273, %v1272
    %v1286 = vpack.c.b16 %v1275, %v1274
    %v1287 = vpack.c.b16 %v1277, %v1276
    %v1288 = vpack.c.b16 %v1279, %v1278
    %v1289 = vpack.c.b16 %v1281, %v1280
    %1298 = vmatpush.bf16.msra.mxu0 %v1289
    %1299 = vmatpush.bf16.msra.mxu0 %v1288
    %1300 = vmatpush.bf16.msra.mxu0 %v1287
    %1301 = vmatpush.bf16.msra.mxu0 %v1286
    %1302 = vmatpush.bf16.msra.mxu0 %v1285
    %1303 = vmatpush.bf16.msra.mxu0 %v1284
    %1304 = vmatpush.bf16.msra.mxu0 %v1283
    %1305 = vmatpush.bf16.msra.mxu0 %v1282
    %1306 = vmatmul.bf16.gmra.mxu0 %v1229
    %v1307 = vpop.f32.mrf.mxu0
    %v1308 = vadd.f32 %v1248, %v1307
    %v1309 = vpop.f32.mrf.mxu0
    %1310 = vdwg.mxu0
    %vm1311 = vcmp.gt.f32.partialorder %v1308, 0.0
    %v1312 = vmul.f32 %v1308, 0.2
    %v1313 = vsel %vm1311, %v1308, %v1312
    %1314 = vrot.lane.b32.xlu0 %v1248, 64
    %v1315 = vpop.permute.xlu0 %1314
    %v1317 = vmul.f32 %v1313, %v1315
    %vm1318 = vcmask 517120
    %v1319 = vsel %vm1318, %v1317, 0.0
    %1320 = vadd.xlane.f32.xlu0 %v1319
    %v1321 = vpop.xlane.xlu0 %1320
    %v1323 = vadd.f32 %v1321, %v1143
    %v1324 = vand.u32 2147483647, %v1323
    %v1325 = vsub.f32 0.0, %v1324
    %v1326 = vmul.f32 %v1325, 1.442695
    %v1327 = vpow.pop %v1326
    %v1328 = vadd.f32 %v1327, 1.0
    %v1329 = vrcp.pop %v1328
    %v1330 = vmul.f32 %v1328, %v1329
    %v1331 = vsub.f32 1.0, %v1330
    %v1332 = vmul.f32 %v1329, %v1331
    %v1333 = vadd.f32 %v1329, %v1332
    %vm1334 = vweird.f32 %v1328
    %vm1335 = vweird.f32 %v1329
    %vm1336 = vmor %vm1334, %vm1335
    %v1337 = vsel %vm1336, %v1329, %v1333
    %v1338 = vand.u32 2147483647, %v1328
    %vm1339 = vcmp.eq.f32.partialorder %v1338, 8.507059e+37
    %v1340 = vand.u32 %v1328, 2147483648
    %v1341 = vor.u32 1.1754944e-38, %v1340
    %v1342 = vsel %vm1339, %v1341, %v1337
    %v1343 = vmul.f32 1.0, %v1342
    %vm1344 = vcmp.ge.f32.partialorder %v1323, 0.0
    %v1345 = vmul.f32 %v1327, %v1343
    %v1346 = vsel %vm1344, %v1343, %v1345
    %1347 = vxpose.xlu0.b32.start [1/16] %v1346, 128
    %1348 = vxpose.xlu0.b32.cont [2/16] 0.0, 128
    %1349 = vxpose.xlu0.b32.cont [3/16] 0.0, 128
    %1350 = vxpose.xlu0.b32.cont [4/16] 0.0, 128
    %1351 = vxpose.xlu0.b32.cont [5/16] 0.0, 128
    %1352 = vxpose.xlu0.b32.cont [6/16] 0.0, 128
    %1353 = vxpose.xlu0.b32.cont [7/16] 0.0, 128
    %1354 = vxpose.xlu0.b32.cont [8/16] 0.0, 128
    %1355 = vxpose.xlu0.b32.cont [9/16] 0.0, 128
    %1356 = vxpose.xlu0.b32.cont [10/16] 0.0, 128
    %1357 = vxpose.xlu0.b32.cont [11/16] 0.0, 128
    %1358 = vxpose.xlu0.b32.cont [12/16] 0.0, 128
    %1359 = vxpose.xlu0.b32.cont [13/16] 0.0, 128
    %1360 = vxpose.xlu0.b32.cont [14/16] 0.0, 128
    %1361 = vxpose.xlu0.b32.cont [15/16] 0.0, 128
    %1362 = vxpose.xlu0.b32.end [16/16] 0.0, 128
    %v1363 = vpop.trf.xlu0
    %v1364 = vpop.trf.xlu0
    %v1365 = vpop.trf.xlu0
    %v1366 = vpop.trf.xlu0
    %v1367 = vpop.trf.xlu0
    %v1368 = vpop.trf.xlu0
    %v1369 = vpop.trf.xlu0
    %v1370 = vpop.trf.xlu0
    %v1371 = vpop.trf.xlu0
    %v1372 = vpop.trf.xlu0
    %v1373 = vpop.trf.xlu0
    %v1374 = vpop.trf.xlu0
    %v1375 = vpop.trf.xlu0
    %v1376 = vpop.trf.xlu0
    %v1377 = vpop.trf.xlu0
    %v1378 = vpop.trf.xlu0
    %vm1379 = vcmask 8192
    %1380 = vst.msk [vmem:[#allocation8] sm:$0x1] %vm1379, %v1363
    // Predicated region
    $region46: #{discriminator_forward.1} parent=1 // pred_check
      _
    $region47: #{discriminator_forward.1} parent=1 // pred_check_branch
      %1382 = sbr.rel (0) target = $region49
    $region48: #{discriminator_forward.1} parent=1 // pred_region
      %1384 = vsyncadd [#allocation4], 0
      %s1386 = sshll.u32 [#allocation8], 4
      %s1387 = int_to_ptr.vmem [resolvable:$true] %s1386
      %s1388 = sshll.u32 %s8, 4
      %s1389 = int_to_ptr.hbm [resolvable:$true] %s1388
      %1391 = dma.vmem_to_hbm [thread:$0]  %s1387, 16, %s1389, [#allocation4]
    $region49: #{discriminator_forward.1} parent=1 // pred_fallthru
      _
    // Predicated region
    $region50: #{discriminator_forward.1} parent=1 // pred_check
      _
    $region51: #{discriminator_forward.1} parent=1 // pred_check_branch
      %1393 = sbr.rel (0) target = $region53
    $region52: #{discriminator_forward.1} parent=1 // pred_region
      %1395 = dma.done [#allocation4], 16
    $region53: #{discriminator_forward.1} parent=1 // pred_fallthru
      _
    %1396 = vsyncpa [#allocation3], 1
    %1397 = vsyncpa [#allocation6], 1
    %1398 = vsyncpa [#allocation4], 1

</llo_original>
